<compile_context>
chip_gen: v7x
topology: tpu7x:2x2x1
jax: 0.10.0
libtpu: 0.0.40
codegen_flags: <defaults>
</compile_context>

<pallas_src>
import jax
import jax.numpy as jnp
from jax import lax
from jax.experimental import pallas as pl
from jax.experimental.pallas import tpu as pltpu


def make_mha_kernel(bt, T, D, H):
    hd = D // H
    M = bt * T

    def kernel(x_ref, wqkv_ref, wo_ref, bo_ref, o_ref):
        # x_ref: (M, D) bf16 ; wqkv_ref: (D, 3D) bf16 ; wo_ref: (D, D) bf16 ; bo_ref: (1, D) f32
        # Fused QKV projection: single full-width bf16 MXU matmul, f32 accumulation.
        # 1/sqrt(head_dim) is already folded into the Wq block of wqkv.
        qkv = jnp.dot(x_ref[...], wqkv_ref[...],
                      preferred_element_type=jnp.float32)            # (M, 3D) f32
        qkv_bf = qkv.astype(jnp.bfloat16)                             # MXU operands for attention core

        # Additive causal bias, built once (finite -1e30: no -inf arithmetic edge cases).
        row = lax.broadcasted_iota(jnp.int32, (T, T), 0)
        col = lax.broadcasted_iota(jnp.int32, (T, T), 1)
        bias = jnp.where(col > row, jnp.float32(-1e30), jnp.float32(0.0))[None]   # (1, T, T)

        # Per-head attention on lane slices of the fused QKV result (H is tiny & static).
        ctx_heads = []
        for h in range(H):
            qh = qkv_bf[:, 0 * D + h * hd: 0 * D + (h + 1) * hd].reshape(bt, T, hd)
            kh = qkv_bf[:, 1 * D + h * hd: 1 * D + (h + 1) * hd].reshape(bt, T, hd)
            vh = qkv_bf[:, 2 * D + h * hd: 2 * D + (h + 1) * hd].reshape(bt, T, hd)

            # bf16 x bf16 MXU matmul, f32 accumulation (scores already scaled via Wq).
            s = jnp.einsum('bqd,bkd->bqk', qh, kh,
                           preferred_element_type=jnp.float32)        # (bt, T, T) f32
            s = s + bias
            m = jnp.max(s, axis=-1, keepdims=True)
            p = jnp.exp(s - m)
            denom = jnp.sum(p, axis=-1, keepdims=True)
            attn = p * pl.reciprocal(denom, approx=True)              # softmax norm on EUP
            # TODO(synk): nn.Dropout on attn weights is identity in eval mode; not applied.
            ctx_h = jnp.einsum('bqk,bkd->bqd', attn.astype(jnp.bfloat16), vh,
                               preferred_element_type=jnp.float32)    # (bt, T, hd) f32
            ctx_heads.append(ctx_h.reshape(M, hd))

        # Concatenate heads back to lane-dense (M, D) and do ONE full-width out-projection.
        ctx = jnp.concatenate(ctx_heads, axis=-1)                     # (M, D) f32
        out = jnp.dot(ctx.astype(jnp.bfloat16), wo_ref[...],
                      preferred_element_type=jnp.float32) + bo_ref[...]
        o_ref[...] = out.astype(o_ref.dtype)                          # no reshape before store

    return kernel


def mha_pallas(x, wqkv, wo_t, bo, num_heads, *, batch_tile=None):
    """x: (B, T, D) bf16.  wqkv: (D, 3D) bf16 (scale folded into the Q block).
    wo_t: (D, D) bf16 (= Wo.T).  bo: (1, D) f32.
    batch_tile: rows of the batch per grid step.  Default = B (single grid step;
    right for single-TC v5e/v6e at small shapes).  On v7x pass B//2 so the batch
    is sharded across both TensorCores via the "parallel" grid axis."""
    B, T, D = x.shape
    bt = batch_tile or B
    assert B % bt == 0
    steps = B // bt
    rows = bt * T

    # Wrapper-side flatten: free layout plumbing, keeps the kernel blocks
    # sublane/lane-dense (no in-kernel reshape across bf16 sublane padding).
    x2d = x.reshape(B * T, D)

    # Constant-index weight blocks don't need a second pipeline buffer when the
    # grid actually iterates (halves resident weight VMEM).
    weight_pm = dict(pipeline_mode=pl.Buffered(1)) if steps > 1 else {}

    kernel = make_mha_kernel(bt, T, D, num_heads)
    out2d = pl.pallas_call(
        kernel,
        out_shape=jax.ShapeDtypeStruct((B * T, D), jnp.bfloat16),
        grid_spec=pltpu.PrefetchScalarGridSpec(
            num_scalar_prefetch=0,
            grid=(steps,),
            in_specs=[
                pl.BlockSpec((rows, D), lambda b: (b, 0)),                 # activations
                pl.BlockSpec((D, 3 * D), lambda b: (0, 0), **weight_pm),  # fused QKV weight
                pl.BlockSpec((D, D), lambda b: (0, 0), **weight_pm),      # out-proj weight
                pl.BlockSpec((1, D), lambda b: (0, 0), **weight_pm),      # out-proj bias
            ],
            out_specs=pl.BlockSpec((rows, D), lambda b: (b, 0)),
        ),
        compiler_params=pltpu.CompilerParams(dimension_semantics=("parallel",)),
    )(x2d, wqkv, wo_t, bo)
    return out2d.reshape(B, T, D)


def reference_mha(x, Wq, Wk, Wv, Wo, bo, H):
    """Pure-JAX f32 replica of the PyTorch forward (eval mode)."""
    B, T, D = x.shape
    hd = D // H
    q = (x @ Wq.T).reshape(B, T, H, hd).transpose(0, 2, 1, 3)
    k = (x @ Wk.T).reshape(B, T, H, hd).transpose(0, 2, 1, 3)
    v = (x @ Wv.T).reshape(B, T, H, hd).transpose(0, 2, 1, 3)
    s = q @ jnp.swapaxes(k, -1, -2)
    mask = jnp.triu(jnp.ones((T, T), bool), 1)
    s = jnp.where(mask, -jnp.inf, s)
    attn = jax.nn.softmax(s / hd ** 0.5, axis=-1)
    ctx = (attn @ v).transpose(0, 2, 1, 3).reshape(B, T, D)
    return ctx @ Wo.T + bo


if __name__ == "__main__":
    # cfg: d_in = d_out = 128, context_length = 8, num_heads = 4, dropout (eval) = identity,
    #      qkv_bias = False
    B, T, D, H = 2, 8, 128, 4
    hd = D // H
    f32 = jnp.float32

    key = jax.random.PRNGKey(0)
    ks = jax.random.split(key, 6)
    x = jax.random.normal(ks[0], (B, T, D), f32)

    # PyTorch-layout parameters (nn.Linear weight is (out_features, in_features)).
    Wq = 0.02 * jax.random.normal(ks[1], (D, D), f32)
    Wk = 0.02 * jax.random.normal(ks[2], (D, D), f32)
    Wv = 0.02 * jax.random.normal(ks[3], (D, D), f32)
    Wo = 0.02 * jax.random.normal(ks[4], (D, D), f32)
    bo = 0.02 * jax.random.normal(ks[5], (D,), f32)

    # Kernel layout: pre-transposed to (in, out), QKV fused along N, 1/sqrt(hd) folded into the
    # Q block, matmul operands in bf16 (f32 accumulation happens inside the kernel).
    scale = 1.0 / (hd ** 0.5)
    wqkv = jnp.concatenate([Wq.T * scale, Wk.T, Wv.T], axis=1).astype(jnp.bfloat16)  # (D, 3D)
    wo_t = Wo.T.astype(jnp.bfloat16)                                                 # (D, D)
    bo2 = bo.reshape(1, D).astype(f32)

    out = mha_pallas(x.astype(jnp.bfloat16), wqkv, wo_t, bo2, H)
    out = jax.block_until_ready(out)

    ref = reference_mha(x, Wq, Wk, Wv, Wo, bo, H)
    out_f32 = out.astype(f32)
    max_err = jnp.max(jnp.abs(out_f32 - ref))
    # Tolerance sized for bf16 matmul operands + bf16 output vs. the f32 reference.
    assert jnp.allclose(out_f32, ref, rtol=3e-2, atol=5e-3), f"max abs err = {max_err}"

    print("KERNEL_OK")
</pallas_src>

<mosaic_0001>
module attributes {stable_mosaic.version = 11 : i64} {
  func.func @kernel(%arg0: i32, %arg1: memref<16x128xbf16, #tpu.memory_space<vmem>>, %arg2: memref<128x384xbf16, #tpu.memory_space<vmem>>, %arg3: memref<128x128xbf16, #tpu.memory_space<vmem>>, %arg4: memref<1x128xf32, #tpu.memory_space<vmem>>, %arg5: memref<16x128xbf16, #tpu.memory_space<vmem>>) attributes {dimension_semantics = [#tpu.dimension_semantics<parallel>], iteration_bounds = array<i64: 1>, scalar_prefetch = 0 : i64, scratch_operands = 0 : i64, tpu.core_type = #tpu.core_type<tc>, window_params = [{transform_indices = @transform_0, window_bounds = array<i64: 16, 128>}, {pipeline_mode = #tpu.pipeline_mode<synchronous>, transform_indices = @transform_1, window_bounds = array<i64: 128, 384>}, {pipeline_mode = #tpu.pipeline_mode<synchronous>, transform_indices = @transform_2, window_bounds = array<i64: 128, 128>}, {pipeline_mode = #tpu.pipeline_mode<synchronous>, transform_indices = @transform_3, window_bounds = array<i64: 1, 128>}, {transform_indices = @transform_4, window_bounds = array<i64: 16, 128>}]} {
    %c0 = arith.constant 0 : index
    %c0_0 = arith.constant 0 : index
    %0 = vector.load %arg1[%c0, %c0_0] : memref<16x128xbf16, #tpu.memory_space<vmem>>, vector<16x128xbf16>
    %c0_1 = arith.constant 0 : index
    %c0_2 = arith.constant 0 : index
    %1 = vector.load %arg2[%c0_1, %c0_2] : memref<128x384xbf16, #tpu.memory_space<vmem>>, vector<128x384xbf16>
    %cst = arith.constant dense<0.000000e+00> : vector<16x384xf32>
    %2 = tpu.matmul %0, %1, %cst {dimension_numbers = #tpu.dot_dimension_numbers<[1], [0], [0], [1], [0, 0, 1, 1], [], []>} : vector<16x128xbf16>, vector<128x384xbf16>, vector<16x384xf32> -> vector<16x384xf32>
    %3 = arith.truncf %2 : vector<16x384xf32> to vector<16x384xbf16>
    %4 = tpu.iota {dimensions = array<i32: 0>} : vector<8x8xi32>
    %5 = tpu.iota {dimensions = array<i32: 1>} : vector<8x8xi32>
    %6 = arith.cmpi sgt, %5, %4 : vector<8x8xi32>
    %cst_3 = arith.constant -1.000000e+30 : f32
    %cst_4 = arith.constant 0.000000e+00 : f32
    %7 = vector.broadcast %cst_3 : f32 to vector<8x8xf32>
    %8 = vector.broadcast %cst_4 : f32 to vector<8x8xf32>
    %9 = arith.select %6, %7, %8 : vector<8x8xi1>, vector<8x8xf32>
    %10 = vector.shape_cast %9 : vector<8x8xf32> to vector<1x8x8xf32>
    %11 = vector.extract_strided_slice %3 {offsets = [0, 0], sizes = [16, 32], strides = [1, 1]} : vector<16x384xbf16> to vector<16x32xbf16>
    %12 = vector.shape_cast %11 : vector<16x32xbf16> to vector<2x8x32xbf16>
    %13 = vector.extract_strided_slice %3 {offsets = [0, 128], sizes = [16, 32], strides = [1, 1]} : vector<16x384xbf16> to vector<16x32xbf16>
    %14 = vector.shape_cast %13 : vector<16x32xbf16> to vector<2x8x32xbf16>
    %15 = vector.extract_strided_slice %3 {offsets = [0, 256], sizes = [16, 32], strides = [1, 1]} : vector<16x384xbf16> to vector<16x32xbf16>
    %16 = vector.shape_cast %15 : vector<16x32xbf16> to vector<2x8x32xbf16>
    "tpu.trace_start"() <{level = 10 : i32, message = "bqd,bkd->bqk"}> : () -> ()
    %cst_5 = arith.constant dense<0.000000e+00> : vector<2x8x8xf32>
    %17 = tpu.matmul %12, %14, %cst_5 {dimension_numbers = #tpu.dot_dimension_numbers<[2], [2], [1], [1], [0, 0, 0, 1, 1, 1], [0], [0]>} : vector<2x8x32xbf16>, vector<2x8x32xbf16>, vector<2x8x8xf32> -> vector<2x8x8xf32>
    "tpu.trace_stop"() : () -> ()
    %18 = vector.broadcast %10 : vector<1x8x8xf32> to vector<2x8x8xf32>
    %19 = arith.addf %17, %18 : vector<2x8x8xf32>
    %cst_6 = arith.constant dense<0xFF800000> : vector<2x8xf32>
    %20 = vector.multi_reduction <maximumf>, %19, %cst_6 [2] : vector<2x8x8xf32> to vector<2x8xf32>
    %21 = vector.shape_cast %20 : vector<2x8xf32> to vector<2x8x1xf32>
    %22 = vector.broadcast %21 : vector<2x8x1xf32> to vector<2x8x8xf32>
    %23 = arith.subf %19, %22 : vector<2x8x8xf32>
    %24 = math.exp %23 : vector<2x8x8xf32>
    %cst_7 = arith.constant dense<0.000000e+00> : vector<2x8xf32>
    %25 = vector.multi_reduction <add>, %24, %cst_7 [2] : vector<2x8x8xf32> to vector<2x8xf32>
    %26 = vector.shape_cast %25 : vector<2x8xf32> to vector<2x8x1xf32>
    %27 = tpu.reciprocal %26 {approx = true} : vector<2x8x1xf32> -> vector<2x8x1xf32>
    %28 = vector.broadcast %27 : vector<2x8x1xf32> to vector<2x8x8xf32>
    %29 = arith.mulf %24, %28 : vector<2x8x8xf32>
    %30 = arith.truncf %29 : vector<2x8x8xf32> to vector<2x8x8xbf16>
    "tpu.trace_start"() <{level = 10 : i32, message = "bqk,bkd->bqd"}> : () -> ()
    %cst_8 = arith.constant dense<0.000000e+00> : vector<2x8x32xf32>
    %31 = tpu.matmul %30, %16, %cst_8 {dimension_numbers = #tpu.dot_dimension_numbers<[2], [1], [1], [2], [0, 0, 0, 1, 1, 2], [0], [0]>} : vector<2x8x8xbf16>, vector<2x8x32xbf16>, vector<2x8x32xf32> -> vector<2x8x32xf32>
    "tpu.trace_stop"() : () -> ()
    %32 = vector.shape_cast %31 : vector<2x8x32xf32> to vector<16x32xf32>
    %33 = vector.extract_strided_slice %3 {offsets = [0, 32], sizes = [16, 32], strides = [1, 1]} : vector<16x384xbf16> to vector<16x32xbf16>
    %34 = vector.shape_cast %33 : vector<16x32xbf16> to vector<2x8x32xbf16>
    %35 = vector.extract_strided_slice %3 {offsets = [0, 160], sizes = [16, 32], strides = [1, 1]} : vector<16x384xbf16> to vector<16x32xbf16>
    %36 = vector.shape_cast %35 : vector<16x32xbf16> to vector<2x8x32xbf16>
    %37 = vector.extract_strided_slice %3 {offsets = [0, 288], sizes = [16, 32], strides = [1, 1]} : vector<16x384xbf16> to vector<16x32xbf16>
    %38 = vector.shape_cast %37 : vector<16x32xbf16> to vector<2x8x32xbf16>
    "tpu.trace_start"() <{level = 10 : i32, message = "bqd,bkd->bqk"}> : () -> ()
    %cst_9 = arith.constant dense<0.000000e+00> : vector<2x8x8xf32>
    %39 = tpu.matmul %34, %36, %cst_9 {dimension_numbers = #tpu.dot_dimension_numbers<[2], [2], [1], [1], [0, 0, 0, 1, 1, 1], [0], [0]>} : vector<2x8x32xbf16>, vector<2x8x32xbf16>, vector<2x8x8xf32> -> vector<2x8x8xf32>
    "tpu.trace_stop"() : () -> ()
    %40 = vector.broadcast %10 : vector<1x8x8xf32> to vector<2x8x8xf32>
    %41 = arith.addf %39, %40 : vector<2x8x8xf32>
    %cst_10 = arith.constant dense<0xFF800000> : vector<2x8xf32>
    %42 = vector.multi_reduction <maximumf>, %41, %cst_10 [2] : vector<2x8x8xf32> to vector<2x8xf32>
    %43 = vector.shape_cast %42 : vector<2x8xf32> to vector<2x8x1xf32>
    %44 = vector.broadcast %43 : vector<2x8x1xf32> to vector<2x8x8xf32>
    %45 = arith.subf %41, %44 : vector<2x8x8xf32>
    %46 = math.exp %45 : vector<2x8x8xf32>
    %cst_11 = arith.constant dense<0.000000e+00> : vector<2x8xf32>
    %47 = vector.multi_reduction <add>, %46, %cst_11 [2] : vector<2x8x8xf32> to vector<2x8xf32>
    %48 = vector.shape_cast %47 : vector<2x8xf32> to vector<2x8x1xf32>
    %49 = tpu.reciprocal %48 {approx = true} : vector<2x8x1xf32> -> vector<2x8x1xf32>
    %50 = vector.broadcast %49 : vector<2x8x1xf32> to vector<2x8x8xf32>
    %51 = arith.mulf %46, %50 : vector<2x8x8xf32>
    %52 = arith.truncf %51 : vector<2x8x8xf32> to vector<2x8x8xbf16>
    "tpu.trace_start"() <{level = 10 : i32, message = "bqk,bkd->bqd"}> : () -> ()
    %cst_12 = arith.constant dense<0.000000e+00> : vector<2x8x32xf32>
    %53 = tpu.matmul %52, %38, %cst_12 {dimension_numbers = #tpu.dot_dimension_numbers<[2], [1], [1], [2], [0, 0, 0, 1, 1, 2], [0], [0]>} : vector<2x8x8xbf16>, vector<2x8x32xbf16>, vector<2x8x32xf32> -> vector<2x8x32xf32>
    "tpu.trace_stop"() : () -> ()
    %54 = vector.shape_cast %53 : vector<2x8x32xf32> to vector<16x32xf32>
    %55 = vector.extract_strided_slice %3 {offsets = [0, 64], sizes = [16, 32], strides = [1, 1]} : vector<16x384xbf16> to vector<16x32xbf16>
    %56 = vector.shape_cast %55 : vector<16x32xbf16> to vector<2x8x32xbf16>
    %57 = vector.extract_strided_slice %3 {offsets = [0, 192], sizes = [16, 32], strides = [1, 1]} : vector<16x384xbf16> to vector<16x32xbf16>
    %58 = vector.shape_cast %57 : vector<16x32xbf16> to vector<2x8x32xbf16>
    %59 = vector.extract_strided_slice %3 {offsets = [0, 320], sizes = [16, 32], strides = [1, 1]} : vector<16x384xbf16> to vector<16x32xbf16>
    %60 = vector.shape_cast %59 : vector<16x32xbf16> to vector<2x8x32xbf16>
    "tpu.trace_start"() <{level = 10 : i32, message = "bqd,bkd->bqk"}> : () -> ()
    %cst_13 = arith.constant dense<0.000000e+00> : vector<2x8x8xf32>
    %61 = tpu.matmul %56, %58, %cst_13 {dimension_numbers = #tpu.dot_dimension_numbers<[2], [2], [1], [1], [0, 0, 0, 1, 1, 1], [0], [0]>} : vector<2x8x32xbf16>, vector<2x8x32xbf16>, vector<2x8x8xf32> -> vector<2x8x8xf32>
    "tpu.trace_stop"() : () -> ()
    %62 = vector.broadcast %10 : vector<1x8x8xf32> to vector<2x8x8xf32>
    %63 = arith.addf %61, %62 : vector<2x8x8xf32>
    %cst_14 = arith.constant dense<0xFF800000> : vector<2x8xf32>
    %64 = vector.multi_reduction <maximumf>, %63, %cst_14 [2] : vector<2x8x8xf32> to vector<2x8xf32>
    %65 = vector.shape_cast %64 : vector<2x8xf32> to vector<2x8x1xf32>
    %66 = vector.broadcast %65 : vector<2x8x1xf32> to vector<2x8x8xf32>
    %67 = arith.subf %63, %66 : vector<2x8x8xf32>
    %68 = math.exp %67 : vector<2x8x8xf32>
    %cst_15 = arith.constant dense<0.000000e+00> : vector<2x8xf32>
    %69 = vector.multi_reduction <add>, %68, %cst_15 [2] : vector<2x8x8xf32> to vector<2x8xf32>
    %70 = vector.shape_cast %69 : vector<2x8xf32> to vector<2x8x1xf32>
    %71 = tpu.reciprocal %70 {approx = true} : vector<2x8x1xf32> -> vector<2x8x1xf32>
    %72 = vector.broadcast %71 : vector<2x8x1xf32> to vector<2x8x8xf32>
    %73 = arith.mulf %68, %72 : vector<2x8x8xf32>
    %74 = arith.truncf %73 : vector<2x8x8xf32> to vector<2x8x8xbf16>
    "tpu.trace_start"() <{level = 10 : i32, message = "bqk,bkd->bqd"}> : () -> ()
    %cst_16 = arith.constant dense<0.000000e+00> : vector<2x8x32xf32>
    %75 = tpu.matmul %74, %60, %cst_16 {dimension_numbers = #tpu.dot_dimension_numbers<[2], [1], [1], [2], [0, 0, 0, 1, 1, 2], [0], [0]>} : vector<2x8x8xbf16>, vector<2x8x32xbf16>, vector<2x8x32xf32> -> vector<2x8x32xf32>
    "tpu.trace_stop"() : () -> ()
    %76 = vector.shape_cast %75 : vector<2x8x32xf32> to vector<16x32xf32>
    %77 = vector.extract_strided_slice %3 {offsets = [0, 96], sizes = [16, 32], strides = [1, 1]} : vector<16x384xbf16> to vector<16x32xbf16>
    %78 = vector.shape_cast %77 : vector<16x32xbf16> to vector<2x8x32xbf16>
    %79 = vector.extract_strided_slice %3 {offsets = [0, 224], sizes = [16, 32], strides = [1, 1]} : vector<16x384xbf16> to vector<16x32xbf16>
    %80 = vector.shape_cast %79 : vector<16x32xbf16> to vector<2x8x32xbf16>
    %81 = vector.extract_strided_slice %3 {offsets = [0, 352], sizes = [16, 32], strides = [1, 1]} : vector<16x384xbf16> to vector<16x32xbf16>
    %82 = vector.shape_cast %81 : vector<16x32xbf16> to vector<2x8x32xbf16>
    "tpu.trace_start"() <{level = 10 : i32, message = "bqd,bkd->bqk"}> : () -> ()
    %cst_17 = arith.constant dense<0.000000e+00> : vector<2x8x8xf32>
    %83 = tpu.matmul %78, %80, %cst_17 {dimension_numbers = #tpu.dot_dimension_numbers<[2], [2], [1], [1], [0, 0, 0, 1, 1, 1], [0], [0]>} : vector<2x8x32xbf16>, vector<2x8x32xbf16>, vector<2x8x8xf32> -> vector<2x8x8xf32>
    "tpu.trace_stop"() : () -> ()
    %84 = vector.broadcast %10 : vector<1x8x8xf32> to vector<2x8x8xf32>
    %85 = arith.addf %83, %84 : vector<2x8x8xf32>
    %cst_18 = arith.constant dense<0xFF800000> : vector<2x8xf32>
    %86 = vector.multi_reduction <maximumf>, %85, %cst_18 [2] : vector<2x8x8xf32> to vector<2x8xf32>
    %87 = vector.shape_cast %86 : vector<2x8xf32> to vector<2x8x1xf32>
    %88 = vector.broadcast %87 : vector<2x8x1xf32> to vector<2x8x8xf32>
    %89 = arith.subf %85, %88 : vector<2x8x8xf32>
    %90 = math.exp %89 : vector<2x8x8xf32>
    %cst_19 = arith.constant dense<0.000000e+00> : vector<2x8xf32>
    %91 = vector.multi_reduction <add>, %90, %cst_19 [2] : vector<2x8x8xf32> to vector<2x8xf32>
    %92 = vector.shape_cast %91 : vector<2x8xf32> to vector<2x8x1xf32>
    %93 = tpu.reciprocal %92 {approx = true} : vector<2x8x1xf32> -> vector<2x8x1xf32>
    %94 = vector.broadcast %93 : vector<2x8x1xf32> to vector<2x8x8xf32>
    %95 = arith.mulf %90, %94 : vector<2x8x8xf32>
    %96 = arith.truncf %95 : vector<2x8x8xf32> to vector<2x8x8xbf16>
    "tpu.trace_start"() <{level = 10 : i32, message = "bqk,bkd->bqd"}> : () -> ()
    %cst_20 = arith.constant dense<0.000000e+00> : vector<2x8x32xf32>
    %97 = tpu.matmul %96, %82, %cst_20 {dimension_numbers = #tpu.dot_dimension_numbers<[2], [1], [1], [2], [0, 0, 0, 1, 1, 2], [0], [0]>} : vector<2x8x8xbf16>, vector<2x8x32xbf16>, vector<2x8x32xf32> -> vector<2x8x32xf32>
    "tpu.trace_stop"() : () -> ()
    %98 = vector.shape_cast %97 : vector<2x8x32xf32> to vector<16x32xf32>
    %99 = tpu.concatenate %32, %54, %76, %98 in 1 : vector<16x32xf32>, vector<16x32xf32>, vector<16x32xf32>, vector<16x32xf32> -> vector<16x128xf32>
    %100 = arith.truncf %99 : vector<16x128xf32> to vector<16x128xbf16>
    %c0_21 = arith.constant 0 : index
    %c0_22 = arith.constant 0 : index
    %101 = vector.load %arg3[%c0_21, %c0_22] : memref<128x128xbf16, #tpu.memory_space<vmem>>, vector<128x128xbf16>
    %cst_23 = arith.constant dense<0.000000e+00> : vector<16x128xf32>
    %102 = tpu.matmul %100, %101, %cst_23 {dimension_numbers = #tpu.dot_dimension_numbers<[1], [0], [0], [1], [0, 0, 1, 1], [], []>} : vector<16x128xbf16>, vector<128x128xbf16>, vector<16x128xf32> -> vector<16x128xf32>
    %c0_24 = arith.constant 0 : index
    %c0_25 = arith.constant 0 : index
    %103 = vector.load %arg4[%c0_24, %c0_25] : memref<1x128xf32, #tpu.memory_space<vmem>>, vector<1x128xf32>
    %104 = vector.broadcast %103 : vector<1x128xf32> to vector<16x128xf32>
    %105 = arith.addf %102, %104 : vector<16x128xf32>
    %106 = arith.truncf %105 : vector<16x128xf32> to vector<16x128xbf16>
    %c0_26 = arith.constant 0 : index
    %c0_27 = arith.constant 0 : index
    %107 = vector.load %arg5[%c0_26, %c0_27] : memref<16x128xbf16, #tpu.memory_space<vmem>>, vector<16x128xbf16>
    tpu.vector_store %arg5[%c0_26, %c0_27], %106 {strides = array<i32>} : memref<16x128xbf16, #tpu.memory_space<vmem>>, vector<16x128xbf16>,
    return
  }
  func.func @transform_0(%arg0: i32) -> (i32, i32) {
    %c0_i32 = arith.constant 0 : i32
    %c0_i32_0 = arith.constant 0 : i32
    return %arg0, %c0_i32 : i32, i32
  }
  func.func @transform_1(%arg0: i32) -> (i32, i32) {
    %c0_i32 = arith.constant 0 : i32
    %c0_i32_0 = arith.constant 0 : i32
    %c0_i32_1 = arith.constant 0 : i32
    return %c0_i32, %c0_i32_0 : i32, i32
  }
  func.func @transform_2(%arg0: i32) -> (i32, i32) {
    %c0_i32 = arith.constant 0 : i32
    %c0_i32_0 = arith.constant 0 : i32
    %c0_i32_1 = arith.constant 0 : i32
    return %c0_i32, %c0_i32_0 : i32, i32
  }
  func.func @transform_3(%arg0: i32) -> (i32, i32) {
    %c0_i32 = arith.constant 0 : i32
    %c0_i32_0 = arith.constant 0 : i32
    %c0_i32_1 = arith.constant 0 : i32
    return %c0_i32, %c0_i32_0 : i32, i32
  }
  func.func @transform_4(%arg0: i32) -> (i32, i32) {
    %c0_i32 = arith.constant 0 : i32
    %c0_i32_0 = arith.constant 0 : i32
    return %arg0, %c0_i32 : i32, i32
  }
}

</mosaic_0001>

<llo_original>
// kernel: tpu_custom_call.1
$region0: #{tpu_custom_call.1}
  #allocation0 [shape = 'u32[]', space=smem, size = 0x4, offset = 0x4, fixed_abs, tag = 'smem constant byte address 0x4 - core index']
  #allocation1 [shape = 'u32[144,128]{1,0:T(1,128)}', space=vmem, size = 0x12000, scoped, tag = 'internal scratch']
  %s0 = inlined_call_operand.hbm [shape: bf16[16,128], index: 0, kind: input, shape index: {}]
  %s1 = inlined_call_operand.hbm [shape: bf16[128,384], index: 1, kind: input, shape index: {}]
  %s2 = inlined_call_operand.hbm [shape: bf16[128,128], index: 2, kind: input, shape index: {}]
  %s3 = inlined_call_operand.vmem [shape: f32[1,128], index: 3, kind: input, shape index: {}]
  %s4 = inlined_call_operand.hbm [shape: bf16[16,128], index: 4, kind: output, shape index: {}]
  %s5 = sld [smem:[#allocation0]]
  $region38: #{tpu_custom_call.1} parent=0
    _
  %s7 = ssub.s32 1, %s5
  %s8 = scalar_select 0, %s7, %s5
  $region1: #{tpu_custom_call.1} parent=0
    #allocation2 [shape = 'u8[4096]{0}', space=vmem, size = 0x1000, scoped, tag = 'input window, operand 0, single buffered']
    #allocation3 [shape = 's32[1]{0}', space=sflag, size = 0x4, scoped, tag = 'scoped memory for tpu_custom_call.1']
    #allocation4 [shape = 's32[1]{0}', space=sflag, size = 0x4, scoped, tag = 'scoped memory for tpu_custom_call.1']
    #allocation5 [shape = 'u8[98304]{0}', space=vmem, size = 0x18000, scoped, tag = 'input window, operand 1, single buffered']
    #allocation6 [shape = 's32[1]{0}', space=sflag, size = 0x4, scoped, tag = 'scoped memory for tpu_custom_call.1']
    #allocation7 [shape = 'u8[32768]{0}', space=vmem, size = 0x8000, scoped, tag = 'input window, operand 2, single buffered']
    #allocation8 [shape = 'u8[4096]{0}', space=vmem, size = 0x1000, scoped, tag = 'output window, operand 0, single buffered']
    %9 = vsyncpa [#allocation3], 0
    %10 = vsyncpa [#allocation6], 0
    %11 = vsyncpa [#allocation4], 0
    // Predicated region
    $region2: #{tpu_custom_call.1} parent=1 // pred_check
      _
    $region3: #{tpu_custom_call.1} parent=1 // pred_check_branch
      %13 = sbr.rel (0) target = $region5
    $region4: #{tpu_custom_call.1} parent=1 // pred_region
      %s15 = ssub.s32 128, 128
      %16 = vsyncadd [#allocation3], %s15
      %s17 = sshll.u32 [#allocation2], 4
      %s18 = int_to_ptr.vmem [resolvable:$true] %s17
      %23 = dma.hbm_to_vmem [thread:$0]  %s0, 128, %s18, [#allocation3], 64, 64, 4
    $region5: #{tpu_custom_call.1} parent=1 // pred_fallthru
      _
    // Predicated region
    $region6: #{tpu_custom_call.1} parent=1 // pred_check
      _
    $region7: #{tpu_custom_call.1} parent=1 // pred_check_branch
      %25 = sbr.rel (0) target = $region9
    $region8: #{tpu_custom_call.1} parent=1 // pred_region
      %s27 = ssub.s32 3072, 3072
      %28 = vsyncadd [#allocation6], %s27
      %s29 = sshll.u32 [#allocation5], 4
      %s30 = int_to_ptr.vmem [resolvable:$true] %s29
      %35 = dma.hbm_to_vmem [thread:$0]  %s1, 3072, %s30, [#allocation6], 192, 192, 12
    $region9: #{tpu_custom_call.1} parent=1 // pred_fallthru
      _
    // Predicated region
    $region10: #{tpu_custom_call.1} parent=1 // pred_check
      _
    $region11: #{tpu_custom_call.1} parent=1 // pred_check_branch
      %37 = sbr.rel (0) target = $region13
    $region12: #{tpu_custom_call.1} parent=1 // pred_region
      %s39 = ssub.s32 1024, 1024
      %40 = vsyncadd [#allocation6], %s39
      %s41 = sshll.u32 [#allocation7], 4
      %s42 = int_to_ptr.vmem [resolvable:$true] %s41
      %47 = dma.hbm_to_vmem [thread:$0]  %s2, 1024, %s42, [#allocation6], 64, 64, 4
    $region13: #{tpu_custom_call.1} parent=1 // pred_fallthru
      _
    // Predicated region
    $region14: #{tpu_custom_call.1} parent=1 // pred_check
      _
    $region15: #{tpu_custom_call.1} parent=1 // pred_check_branch
      %49 = sbr.rel (0) target = $region17
    $region16: #{tpu_custom_call.1} parent=1 // pred_region
      _
    $region17: #{tpu_custom_call.1} parent=1 // pred_fallthru
      _
    // Predicated region
    $region18: #{tpu_custom_call.1} parent=1 // pred_check
      _
    $region19: #{tpu_custom_call.1} parent=1 // pred_check_branch
      %51 = sbr.rel (0) target = $region21
    $region20: #{tpu_custom_call.1} parent=1 // pred_region
      %52 = dma.done [#allocation3], 128
    $region21: #{tpu_custom_call.1} parent=1 // pred_fallthru
      _
    // Predicated region
    $region22: #{tpu_custom_call.1} parent=1 // pred_check
      _
    $region23: #{tpu_custom_call.1} parent=1 // pred_check_branch
      %54 = sbr.rel (0) target = $region25
    $region24: #{tpu_custom_call.1} parent=1 // pred_region
      %55 = dma.done [#allocation6], 3072
    $region25: #{tpu_custom_call.1} parent=1 // pred_fallthru
      _
    // Predicated region
    $region26: #{tpu_custom_call.1} parent=1 // pred_check
      _
    $region27: #{tpu_custom_call.1} parent=1 // pred_check_branch
      %57 = sbr.rel (0) target = $region29
    $region28: #{tpu_custom_call.1} parent=1 // pred_region
      %58 = dma.done [#allocation6], 1024
    $region29: #{tpu_custom_call.1} parent=1 // pred_fallthru
      _
    %v60 = vld [vmem:[#allocation2] sm:$0xf]
    %v61 = vld [vmem:[#allocation2 + $0x4] sm:$0xf]
    %v62 = vld [vmem:[#allocation5] sm:$0xff]
    %v63 = vld [vmem:[#allocation5 + $0x8] sm:$0xf]
    %v64 = vld [vmem:[#allocation5 + $0xc] sm:$0xff]
    %v65 = vld [vmem:[#allocation5 + $0x14] sm:$0xf]
    %v66 = vld [vmem:[#allocation5 + $0x18] sm:$0xff]
    %v67 = vld [vmem:[#allocation5 + $0x20] sm:$0xf]
    %v68 = vld [vmem:[#allocation5 + $0x24] sm:$0xff]
    %v69 = vld [vmem:[#allocation5 + $0x2c] sm:$0xf]
    %v70 = vld [vmem:[#allocation5 + $0x30] sm:$0xff]
    %v71 = vld [vmem:[#allocation5 + $0x38] sm:$0xf]
    %v72 = vld [vmem:[#allocation5 + $0x3c] sm:$0xff]
    %v73 = vld [vmem:[#allocation5 + $0x44] sm:$0xf]
    %v74 = vld [vmem:[#allocation5 + $0x48] sm:$0xff]
    %v75 = vld [vmem:[#allocation5 + $0x50] sm:$0xf]
    %v76 = vld [vmem:[#allocation5 + $0x54] sm:$0xff]
    %v77 = vld [vmem:[#allocation5 + $0x5c] sm:$0xf]
    %v78 = vld [vmem:[#allocation5 + $0x60] sm:$0xff]
    %v79 = vld [vmem:[#allocation5 + $0x68] sm:$0xf]
    %v80 = vld [vmem:[#allocation5 + $0x6c] sm:$0xff]
    %v81 = vld [vmem:[#allocation5 + $0x74] sm:$0xf]
    %v82 = vld [vmem:[#allocation5 + $0x78] sm:$0xff]
    %v83 = vld [vmem:[#allocation5 + $0x80] sm:$0xf]
    %v84 = vld [vmem:[#allocation5 + $0x84] sm:$0xff]
    %v85 = vld [vmem:[#allocation5 + $0x8c] sm:$0xf]
    %v86 = vld [vmem:[#allocation5 + $0x90] sm:$0xff]
    %v87 = vld [vmem:[#allocation5 + $0x98] sm:$0xf]
    %v88 = vld [vmem:[#allocation5 + $0x9c] sm:$0xff]
    %v89 = vld [vmem:[#allocation5 + $0xa4] sm:$0xf]
    %v90 = vld [vmem:[#allocation5 + $0xa8] sm:$0xff]
    %v91 = vld [vmem:[#allocation5 + $0xb0] sm:$0xf]
    %v92 = vld [vmem:[#allocation5 + $0xb4] sm:$0xff]
    %v93 = vld [vmem:[#allocation5 + $0xbc] sm:$0xf]
    %v96 = vunpack.c.l.b16 %v60
    %v97 = vunpack.c.l.b16 %v61
    %v98 = vpack.c.b16 %v97, %v96
    %v132 = vunpack.c.l.b16 %v62
    %v133 = vunpack.c.h.b16 %v62
    %v134 = vunpack.c.l.b16 %v63
    %v135 = vunpack.c.l.b16 %v64
    %v136 = vunpack.c.h.b16 %v64
    %v137 = vunpack.c.l.b16 %v65
    %v138 = vunpack.c.l.b16 %v66
    %v139 = vunpack.c.h.b16 %v66
    %v140 = vunpack.c.l.b16 %v67
    %v141 = vunpack.c.l.b16 %v68
    %v142 = vunpack.c.h.b16 %v68
    %v143 = vunpack.c.l.b16 %v69
    %v144 = vunpack.c.l.b16 %v70
    %v145 = vunpack.c.h.b16 %v70
    %v146 = vunpack.c.l.b16 %v71
    %v147 = vunpack.c.l.b16 %v72
    %v148 = vunpack.c.h.b16 %v72
    %v149 = vunpack.c.l.b16 %v73
    %v150 = vunpack.c.l.b16 %v74
    %v151 = vunpack.c.h.b16 %v74
    %v152 = vunpack.c.l.b16 %v75
    %v153 = vunpack.c.l.b16 %v76
    %v154 = vunpack.c.h.b16 %v76
    %v155 = vunpack.c.l.b16 %v77
    %v156 = vunpack.c.l.b16 %v78
    %v157 = vunpack.c.h.b16 %v78
    %v158 = vunpack.c.l.b16 %v79
    %v159 = vunpack.c.l.b16 %v80
    %v160 = vunpack.c.h.b16 %v80
    %v161 = vunpack.c.l.b16 %v81
    %v162 = vunpack.c.l.b16 %v82
    %v163 = vunpack.c.h.b16 %v82
    %v164 = vunpack.c.l.b16 %v83
    %v165 = vunpack.c.l.b16 %v84
    %v166 = vunpack.c.h.b16 %v84
    %v167 = vunpack.c.l.b16 %v85
    %v168 = vunpack.c.l.b16 %v86
    %v169 = vunpack.c.h.b16 %v86
    %v170 = vunpack.c.l.b16 %v87
    %v171 = vunpack.c.l.b16 %v88
    %v172 = vunpack.c.h.b16 %v88
    %v173 = vunpack.c.l.b16 %v89
    %v174 = vunpack.c.l.b16 %v90
    %v175 = vunpack.c.h.b16 %v90
    %v176 = vunpack.c.l.b16 %v91
    %v177 = vunpack.c.l.b16 %v92
    %v178 = vunpack.c.h.b16 %v92
    %v179 = vunpack.c.l.b16 %v93
    %v180 = vpack.c.b16 %v135, %v132
    %v181 = vpack.c.b16 %v136, %v133
    %v182 = vpack.c.b16 %v137, %v134
    %v183 = vpack.c.b16 %v141, %v138
    %v184 = vpack.c.b16 %v142, %v139
    %v185 = vpack.c.b16 %v143, %v140
    %v186 = vpack.c.b16 %v147, %v144
    %v187 = vpack.c.b16 %v148, %v145
    %v188 = vpack.c.b16 %v149, %v146
    %v189 = vpack.c.b16 %v153, %v150
    %v190 = vpack.c.b16 %v154, %v151
    %v191 = vpack.c.b16 %v155, %v152
    %v192 = vpack.c.b16 %v159, %v156
    %v193 = vpack.c.b16 %v160, %v157
    %v194 = vpack.c.b16 %v161, %v158
    %v195 = vpack.c.b16 %v165, %v162
    %v196 = vpack.c.b16 %v166, %v163
    %v197 = vpack.c.b16 %v167, %v164
    %v198 = vpack.c.b16 %v171, %v168
    %v199 = vpack.c.b16 %v172, %v169
    %v200 = vpack.c.b16 %v173, %v170
    %v201 = vpack.c.b16 %v177, %v174
    %v202 = vpack.c.b16 %v178, %v175
    %v203 = vpack.c.b16 %v179, %v176
    %228 = vmatprep.subr.bf16.mxu0 %v181
    %229 = vmatpush1.bf16.msra.mxu0 %v180
    %230 = vmatprep.subr.bf16.mxu0 %v184
    %231 = vmatpush1.bf16.msra.mxu0 %v183
    %232 = vmatprep.subr.bf16.mxu0 %v187
    %233 = vmatpush1.bf16.msra.mxu0 %v186
    %234 = vmatprep.subr.bf16.mxu0 %v190
    %235 = vmatpush1.bf16.msra.mxu0 %v189
    %236 = vmatprep.subr.bf16.mxu0 %v193
    %237 = vmatpush1.bf16.msra.mxu0 %v192
    %238 = vmatprep.subr.bf16.mxu0 %v196
    %239 = vmatpush1.bf16.msra.mxu0 %v195
    %240 = vmatprep.subr.bf16.mxu0 %v199
    %241 = vmatpush1.bf16.msra.mxu0 %v198
    %242 = vmatprep.subr.bf16.mxu0 %v202
    %243 = vmatpush1.bf16.msra.mxu0 %v201
    %244 = vmatprep.subr.bf16.mxu0 0
    %245 = vmatpush1.bf16.msra.mxu0 0
    %246 = vmatprep.subr.bf16.mxu0 0
    %247 = vmatpush1.bf16.msra.mxu0 0
    %248 = vmatprep.subr.bf16.mxu0 0
    %249 = vmatpush1.bf16.msra.mxu0 0
    %250 = vmatprep.subr.bf16.mxu0 0
    %251 = vmatpush1.bf16.msra.mxu0 0
    %252 = vmatprep.subr.bf16.mxu0 0
    %253 = vmatpush1.bf16.msra.mxu0 0
    %254 = vmatprep.subr.bf16.mxu0 0
    %255 = vmatpush1.bf16.msra.mxu0 0
    %256 = vmatprep.subr.bf16.mxu0 0
    %257 = vmatpush1.bf16.msra.mxu0 0
    %258 = vmatprep.subr.bf16.mxu0 0
    %259 = vmatpush1.bf16.msra.mxu0 0
    %260 = vmatprep.mubr.bf16.mxu0 0
    %261 = vmatmul.mubr.bf16.gmra.mrb[0].mxu0 %v98
    %v262 = vpop.f32.mrb[0].mxu0
    %v263 = vadd.f32 0.0, %v262
    %v264 = vpop.f32.mrb[0].mxu0
    %v265 = vadd.f32 0.0, %v264
    %v266 = vpop.f32.mrb[0].mxu0
    %v267 = vadd.f32 0.0, %v266
    %v268 = vpop.f32.mrb[0].mxu0
    %v269 = vadd.f32 0.0, %v268
    %270 = vdwg.mxu0
    %271 = vmatprep.subr.bf16.mxu0 0
    %272 = vmatpush1.bf16.msra.mxu0 %v182
    %273 = vmatprep.subr.bf16.mxu0 0
    %274 = vmatpush1.bf16.msra.mxu0 %v185
    %275 = vmatprep.subr.bf16.mxu0 0
    %276 = vmatpush1.bf16.msra.mxu0 %v188
    %277 = vmatprep.subr.bf16.mxu0 0
    %278 = vmatpush1.bf16.msra.mxu0 %v191
    %279 = vmatprep.subr.bf16.mxu0 0
    %280 = vmatpush1.bf16.msra.mxu0 %v194
    %281 = vmatprep.subr.bf16.mxu0 0
    %282 = vmatpush1.bf16.msra.mxu0 %v197
    %283 = vmatprep.subr.bf16.mxu0 0
    %284 = vmatpush1.bf16.msra.mxu0 %v200
    %285 = vmatprep.subr.bf16.mxu0 0
    %286 = vmatpush1.bf16.msra.mxu0 %v203
    %287 = vmatprep.subr.bf16.mxu0 0
    %288 = vmatpush1.bf16.msra.mxu0 0
    %289 = vmatprep.subr.bf16.mxu0 0
    %290 = vmatpush1.bf16.msra.mxu0 0
    %291 = vmatprep.subr.bf16.mxu0 0
    %292 = vmatpush1.bf16.msra.mxu0 0
    %293 = vmatprep.subr.bf16.mxu0 0
    %294 = vmatpush1.bf16.msra.mxu0 0
    %295 = vmatprep.subr.bf16.mxu0 0
    %296 = vmatpush1.bf16.msra.mxu0 0
    %297 = vmatprep.subr.bf16.mxu0 0
    %298 = vmatpush1.bf16.msra.mxu0 0
    %299 = vmatprep.subr.bf16.mxu0 0
    %300 = vmatpush1.bf16.msra.mxu0 0
    %301 = vmatprep.subr.bf16.mxu0 0
    %302 = vmatpush1.bf16.msra.mxu0 0
    %303 = vmatprep.mubr.bf16.mxu0 0
    %304 = vmatmul.mubr.bf16.gmra.mrb[0].mxu0 %v98
    %v305 = vpop.f32.mrb[0].mxu0
    %v306 = vadd.f32 0.0, %v305
    %v307 = vpop.f32.mrb[0].mxu0
    %v308 = vpop.f32.mrb[0].mxu0
    %v309 = vadd.f32 0.0, %v308
    %v310 = vpop.f32.mrb[0].mxu0
    %311 = vdwg.mxu0
    %v312 = vpack.c.bf16 %v267, %v263
    %v313 = vpack.c.bf16 %v269, %v265
    %v314 = vpack.c.bf16 %v309, %v306
    %v315 = vlaneseq
    %v316 = vshrl.u32 %v315, 7
    %v317 = vlaneseq
    %v318 = vand.u32 %v317, 127
    %vm319 = vcmp.gt.s32.totalorder %v318, %v316
    %v320 = vsel %vm319, -1e+30, 0.0
    %v322 = vunpack.c.l.b16 %v312
    %v323 = vunpack.c.h.b16 %v312
    %v324 = vpack.c.b16 %v322, %v322
    %v325 = vpack.c.b16 %v323, %v323
    %v327 = vunpack.c.l.b16 %v313
    %v328 = vunpack.c.h.b16 %v313
    %v329 = vpack.c.b16 %v327, %v327
    %v330 = vpack.c.b16 %v328, %v328
    %v332 = vunpack.c.l.b16 %v314
    %v333 = vunpack.c.h.b16 %v314
    %v334 = vpack.c.b16 %v332, %v332
    %v335 = vpack.c.b16 %v333, %v333
    %vm336 = vcmask 261120
    %v338 = vsel %vm336, %v324, 0
    %v341 = vsel %vm336, %v329, 0
    %343 = vmatprep.subr.bf16.mxu0 0
    %344 = vmatpush1.bf16.xpose.msra.mxu0 %v341
    %345 = vmatprep.subr.bf16.mxu0 0
    %346 = vmatpush1.bf16.xpose.msra.mxu0 0
    %347 = vmatprep.subr.bf16.mxu0 0
    %348 = vmatpush1.bf16.xpose.msra.mxu0 0
    %349 = vmatprep.subr.bf16.mxu0 0
    %350 = vmatpush1.bf16.xpose.msra.mxu0 0
    %351 = vmatprep.subr.bf16.mxu0 0
    %352 = vmatpush1.bf16.xpose.msra.mxu0 0
    %353 = vmatprep.subr.bf16.mxu0 0
    %354 = vmatpush1.bf16.xpose.msra.mxu0 0
    %355 = vmatprep.subr.bf16.mxu0 0
    %356 = vmatpush1.bf16.xpose.msra.mxu0 0
    %357 = vmatprep.subr.bf16.mxu0 0
    %358 = vmatpush1.bf16.xpose.msra.mxu0 0
    %359 = vmatprep.subr.bf16.mxu0 0
    %360 = vmatpush1.bf16.xpose.msra.mxu0 0
    %361 = vmatprep.subr.bf16.mxu0 0
    %362 = vmatpush1.bf16.xpose.msra.mxu0 0
    %363 = vmatprep.subr.bf16.mxu0 0
    %364 = vmatpush1.bf16.xpose.msra.mxu0 0
    %365 = vmatprep.subr.bf16.mxu0 0
    %366 = vmatpush1.bf16.xpose.msra.mxu0 0
    %367 = vmatprep.subr.bf16.mxu0 0
    %368 = vmatpush1.bf16.xpose.msra.mxu0 0
    %369 = vmatprep.subr.bf16.mxu0 0
    %370 = vmatpush1.bf16.xpose.msra.mxu0 0
    %371 = vmatprep.subr.bf16.mxu0 0
    %372 = vmatpush1.bf16.xpose.msra.mxu0 0
    %373 = vmatprep.subr.bf16.mxu0 0
    %374 = vmatpush1.bf16.xpose.msra.mxu0 0
    %375 = vmatprep.mubr.bf16.mxu0 0
    %376 = vmatmul.mubr.bf16.gmra.mrb[0].mxu0 %v338
    %v377 = vpop.f32.mrb[0].mxu0
    %v378 = vadd.f32 %v320, %v377
    %v379 = vpop.f32.mrb[0].mxu0
    %v380 = vpop.f32.mrb[0].mxu0
    %v381 = vpop.f32.mrb[0].mxu0
    %382 = vdwg.mxu0
    %v384 = vsel %vm336, %v325, 0
    %v387 = vsel %vm336, %v330, 0
    %389 = vmatprep.subr.bf16.mxu0 0
    %390 = vmatpush1.bf16.xpose.msra.mxu0 %v387
    %391 = vmatprep.subr.bf16.mxu0 0
    %392 = vmatpush1.bf16.xpose.msra.mxu0 0
    %393 = vmatprep.subr.bf16.mxu0 0
    %394 = vmatpush1.bf16.xpose.msra.mxu0 0
    %395 = vmatprep.subr.bf16.mxu0 0
    %396 = vmatpush1.bf16.xpose.msra.mxu0 0
    %397 = vmatprep.subr.bf16.mxu0 0
    %398 = vmatpush1.bf16.xpose.msra.mxu0 0
    %399 = vmatprep.subr.bf16.mxu0 0
    %400 = vmatpush1.bf16.xpose.msra.mxu0 0
    %401 = vmatprep.subr.bf16.mxu0 0
    %402 = vmatpush1.bf16.xpose.msra.mxu0 0
    %403 = vmatprep.subr.bf16.mxu0 0
    %404 = vmatpush1.bf16.xpose.msra.mxu0 0
    %405 = vmatprep.subr.bf16.mxu0 0
    %406 = vmatpush1.bf16.xpose.msra.mxu0 0
    %407 = vmatprep.subr.bf16.mxu0 0
    %408 = vmatpush1.bf16.xpose.msra.mxu0 0
    %409 = vmatprep.subr.bf16.mxu0 0
    %410 = vmatpush1.bf16.xpose.msra.mxu0 0
    %411 = vmatprep.subr.bf16.mxu0 0
    %412 = vmatpush1.bf16.xpose.msra.mxu0 0
    %413 = vmatprep.subr.bf16.mxu0 0
    %414 = vmatpush1.bf16.xpose.msra.mxu0 0
    %415 = vmatprep.subr.bf16.mxu0 0
    %416 = vmatpush1.bf16.xpose.msra.mxu0 0
    %417 = vmatprep.subr.bf16.mxu0 0
    %418 = vmatpush1.bf16.xpose.msra.mxu0 0
    %419 = vmatprep.subr.bf16.mxu0 0
    %420 = vmatpush1.bf16.xpose.msra.mxu0 0
    %421 = vmatprep.mubr.bf16.mxu0 0
    %422 = vmatmul.mubr.bf16.gmra.mrb[0].mxu0 %v384
    %v423 = vpop.f32.mrb[0].mxu0
    %v424 = vadd.f32 %v320, %v423
    %v425 = vpop.f32.mrb[0].mxu0
    %v426 = vpop.f32.mrb[0].mxu0
    %v427 = vpop.f32.mrb[0].mxu0
    %428 = vdwg.mxu0
    %vm429 = vcmask 64512
    %v430 = vsel %vm429, %v378, -inf
    %431 = vmax.xlane.f32.xlu0 %v430
    %v432 = vpop.xlane.xlu0 %431
    %v433 = vsel %vm429, %v424, -inf
    %434 = vmax.xlane.f32.xlu0 %v433
    %v435 = vpop.xlane.xlu0 %434
    %v436 = vsub.f32 %v378, %v432
    %v437 = vsub.f32 %v424, %v435
    %v438 = vmul.f32 %v436, 1.442695
    %v439 = vpow.pop %v438
    %v440 = vmul.f32 %v437, 1.442695
    %v441 = vpow.pop %v440
    %v442 = vsel %vm429, %v439, 0.0
    %443 = vadd.xlane.f32.xlu0 %v442
    %v444 = vpop.xlane.xlu0 %443
    %v445 = vsel %vm429, %v441, 0.0
    %446 = vadd.xlane.f32.xlu0 %v445
    %v447 = vpop.xlane.xlu0 %446
    %v448 = vrcp.pop %v444
    %v449 = vrcp.pop %v447
    %v450 = vmul.f32 %v439, %v448
    %v451 = vmul.f32 %v441, %v449
    %v452 = vpack.c.bf16 %v450, %v450
    %v453 = vpack.c.bf16 %v451, %v451
    %v455 = vsel %vm429, %v452, 0
    %vm457 = vcmask 1043456
    %v459 = vsel %vm457, %v334, 0
    %461 = vmatprep.subr.bf16.mxu0 0
    %462 = vmatpush1.bf16.msra.mxu0 %v459
    %463 = vmatprep.subr.bf16.mxu0 0
    %464 = vmatpush1.bf16.msra.mxu0 0
    %465 = vmatprep.subr.bf16.mxu0 0
    %466 = vmatpush1.bf16.msra.mxu0 0
    %467 = vmatprep.subr.bf16.mxu0 0
    %468 = vmatpush1.bf16.msra.mxu0 0
    %469 = vmatprep.subr.bf16.mxu0 0
    %470 = vmatpush1.bf16.msra.mxu0 0
    %471 = vmatprep.subr.bf16.mxu0 0
    %472 = vmatpush1.bf16.msra.mxu0 0
    %473 = vmatprep.subr.bf16.mxu0 0
    %474 = vmatpush1.bf16.msra.mxu0 0
    %475 = vmatprep.subr.bf16.mxu0 0
    %476 = vmatpush1.bf16.msra.mxu0 0
    %477 = vmatprep.subr.bf16.mxu0 0
    %478 = vmatpush1.bf16.msra.mxu0 0
    %479 = vmatprep.subr.bf16.mxu0 0
    %480 = vmatpush1.bf16.msra.mxu0 0
    %481 = vmatprep.subr.bf16.mxu0 0
    %482 = vmatpush1.bf16.msra.mxu0 0
    %483 = vmatprep.subr.bf16.mxu0 0
    %484 = vmatpush1.bf16.msra.mxu0 0
    %485 = vmatprep.subr.bf16.mxu0 0
    %486 = vmatpush1.bf16.msra.mxu0 0
    %487 = vmatprep.subr.bf16.mxu0 0
    %488 = vmatpush1.bf16.msra.mxu0 0
    %489 = vmatprep.subr.bf16.mxu0 0
    %490 = vmatpush1.bf16.msra.mxu0 0
    %491 = vmatprep.subr.bf16.mxu0 0
    %492 = vmatpush1.bf16.msra.mxu0 0
    %493 = vmatprep.mubr.bf16.mxu0 0
    %494 = vmatmul.mubr.bf16.gmra.mrb[0].mxu0 %v455
    %v495 = vpop.f32.mrb[0].mxu0
    %v496 = vadd.f32 0.0, %v495
    %v497 = vpop.f32.mrb[0].mxu0
    %v498 = vpop.f32.mrb[0].mxu0
    %v499 = vpop.f32.mrb[0].mxu0
    %500 = vdwg.mxu0
    %v502 = vsel %vm429, %v453, 0
    %v505 = vsel %vm457, %v335, 0
    %507 = vmatprep.subr.bf16.mxu0 0
    %508 = vmatpush1.bf16.msra.mxu0 %v505
    %509 = vmatprep.subr.bf16.mxu0 0
    %510 = vmatpush1.bf16.msra.mxu0 0
    %511 = vmatprep.subr.bf16.mxu0 0
    %512 = vmatpush1.bf16.msra.mxu0 0
    %513 = vmatprep.subr.bf16.mxu0 0
    %514 = vmatpush1.bf16.msra.mxu0 0
    %515 = vmatprep.subr.bf16.mxu0 0
    %516 = vmatpush1.bf16.msra.mxu0 0
    %517 = vmatprep.subr.bf16.mxu0 0
    %518 = vmatpush1.bf16.msra.mxu0 0
    %519 = vmatprep.subr.bf16.mxu0 0
    %520 = vmatpush1.bf16.msra.mxu0 0
    %521 = vmatprep.subr.bf16.mxu0 0
    %522 = vmatpush1.bf16.msra.mxu0 0
    %523 = vmatprep.subr.bf16.mxu0 0
    %524 = vmatpush1.bf16.msra.mxu0 0
    %525 = vmatprep.subr.bf16.mxu0 0
    %526 = vmatpush1.bf16.msra.mxu0 0
    %527 = vmatprep.subr.bf16.mxu0 0
    %528 = vmatpush1.bf16.msra.mxu0 0
    %529 = vmatprep.subr.bf16.mxu0 0
    %530 = vmatpush1.bf16.msra.mxu0 0
    %531 = vmatprep.subr.bf16.mxu0 0
    %532 = vmatpush1.bf16.msra.mxu0 0
    %533 = vmatprep.subr.bf16.mxu0 0
    %534 = vmatpush1.bf16.msra.mxu0 0
    %535 = vmatprep.subr.bf16.mxu0 0
    %536 = vmatpush1.bf16.msra.mxu0 0
    %537 = vmatprep.subr.bf16.mxu0 0
    %538 = vmatpush1.bf16.msra.mxu0 0
    %539 = vmatprep.mubr.bf16.mxu0 0
    %540 = vmatmul.mubr.bf16.gmra.mrb[0].mxu0 %v502
    %v541 = vpop.f32.mrb[0].mxu0
    %v542 = vadd.f32 0.0, %v541
    %v543 = vpop.f32.mrb[0].mxu0
    %v544 = vpop.f32.mrb[0].mxu0
    %v545 = vpop.f32.mrb[0].mxu0
    %546 = vdwg.mxu0
    %547 = vrot.lane.b32.xlu0 %v324, 96
    %v548 = vpop.permute.xlu0 %547
    %549 = vrot.lane.b32.xlu0 %v329, 96
    %v550 = vpop.permute.xlu0 %549
    %v552 = vsel %vm336, %v548, 0
    %v555 = vsel %vm336, %v550, 0
    %557 = vmatprep.subr.bf16.mxu0 0
    %558 = vmatpush1.bf16.xpose.msra.mxu0 %v555
    %559 = vmatprep.subr.bf16.mxu0 0
    %560 = vmatpush1.bf16.xpose.msra.mxu0 0
    %561 = vmatprep.subr.bf16.mxu0 0
    %562 = vmatpush1.bf16.xpose.msra.mxu0 0
    %563 = vmatprep.subr.bf16.mxu0 0
    %564 = vmatpush1.bf16.xpose.msra.mxu0 0
    %565 = vmatprep.subr.bf16.mxu0 0
    %566 = vmatpush1.bf16.xpose.msra.mxu0 0
    %567 = vmatprep.subr.bf16.mxu0 0
    %568 = vmatpush1.bf16.xpose.msra.mxu0 0
    %569 = vmatprep.subr.bf16.mxu0 0
    %570 = vmatpush1.bf16.xpose.msra.mxu0 0
    %571 = vmatprep.subr.bf16.mxu0 0
    %572 = vmatpush1.bf16.xpose.msra.mxu0 0
    %573 = vmatprep.subr.bf16.mxu0 0
    %574 = vmatpush1.bf16.xpose.msra.mxu0 0
    %575 = vmatprep.subr.bf16.mxu0 0
    %576 = vmatpush1.bf16.xpose.msra.mxu0 0
    %577 = vmatprep.subr.bf16.mxu0 0
    %578 = vmatpush1.bf16.xpose.msra.mxu0 0
    %579 = vmatprep.subr.bf16.mxu0 0
    %580 = vmatpush1.bf16.xpose.msra.mxu0 0
    %581 = vmatprep.subr.bf16.mxu0 0
    %582 = vmatpush1.bf16.xpose.msra.mxu0 0
    %583 = vmatprep.subr.bf16.mxu0 0
    %584 = vmatpush1.bf16.xpose.msra.mxu0 0
    %585 = vmatprep.subr.bf16.mxu0 0
    %586 = vmatpush1.bf16.xpose.msra.mxu0 0
    %587 = vmatprep.subr.bf16.mxu0 0
    %588 = vmatpush1.bf16.xpose.msra.mxu0 0
    %589 = vmatprep.mubr.bf16.mxu0 0
    %590 = vmatmul.mubr.bf16.gmra.mrb[0].mxu0 %v552
    %v591 = vpop.f32.mrb[0].mxu0
    %v592 = vadd.f32 %v320, %v591
    %v593 = vpop.f32.mrb[0].mxu0
    %v594 = vpop.f32.mrb[0].mxu0
    %v595 = vpop.f32.mrb[0].mxu0
    %596 = vdwg.mxu0
    %597 = vrot.lane.b32.xlu0 %v325, 96
    %v598 = vpop.permute.xlu0 %597
    %599 = vrot.lane.b32.xlu0 %v330, 96
    %v600 = vpop.permute.xlu0 %599
    %v602 = vsel %vm336, %v598, 0
    %v605 = vsel %vm336, %v600, 0
    %607 = vmatprep.subr.bf16.mxu0 0
    %608 = vmatpush1.bf16.xpose.msra.mxu0 %v605
    %609 = vmatprep.subr.bf16.mxu0 0
    %610 = vmatpush1.bf16.xpose.msra.mxu0 0
    %611 = vmatprep.subr.bf16.mxu0 0
    %612 = vmatpush1.bf16.xpose.msra.mxu0 0
    %613 = vmatprep.subr.bf16.mxu0 0
    %614 = vmatpush1.bf16.xpose.msra.mxu0 0
    %615 = vmatprep.subr.bf16.mxu0 0
    %616 = vmatpush1.bf16.xpose.msra.mxu0 0
    %617 = vmatprep.subr.bf16.mxu0 0
    %618 = vmatpush1.bf16.xpose.msra.mxu0 0
    %619 = vmatprep.subr.bf16.mxu0 0
    %620 = vmatpush1.bf16.xpose.msra.mxu0 0
    %621 = vmatprep.subr.bf16.mxu0 0
    %622 = vmatpush1.bf16.xpose.msra.mxu0 0
    %623 = vmatprep.subr.bf16.mxu0 0
    %624 = vmatpush1.bf16.xpose.msra.mxu0 0
    %625 = vmatprep.subr.bf16.mxu0 0
    %626 = vmatpush1.bf16.xpose.msra.mxu0 0
    %627 = vmatprep.subr.bf16.mxu0 0
    %628 = vmatpush1.bf16.xpose.msra.mxu0 0
    %629 = vmatprep.subr.bf16.mxu0 0
    %630 = vmatpush1.bf16.xpose.msra.mxu0 0
    %631 = vmatprep.subr.bf16.mxu0 0
    %632 = vmatpush1.bf16.xpose.msra.mxu0 0
    %633 = vmatprep.subr.bf16.mxu0 0
    %634 = vmatpush1.bf16.xpose.msra.mxu0 0
    %635 = vmatprep.subr.bf16.mxu0 0
    %636 = vmatpush1.bf16.xpose.msra.mxu0 0
    %637 = vmatprep.subr.bf16.mxu0 0
    %638 = vmatpush1.bf16.xpose.msra.mxu0 0
    %639 = vmatprep.mubr.bf16.mxu0 0
    %640 = vmatmul.mubr.bf16.gmra.mrb[0].mxu0 %v602
    %v641 = vpop.f32.mrb[0].mxu0
    %v642 = vadd.f32 %v320, %v641
    %v643 = vpop.f32.mrb[0].mxu0
    %v644 = vpop.f32.mrb[0].mxu0
    %v645 = vpop.f32.mrb[0].mxu0
    %646 = vdwg.mxu0
    %v647 = vsel %vm429, %v592, -inf
    %648 = vmax.xlane.f32.xlu0 %v647
    %v649 = vpop.xlane.xlu0 %648
    %v650 = vsel %vm429, %v642, -inf
    %651 = vmax.xlane.f32.xlu0 %v650
    %v652 = vpop.xlane.xlu0 %651
    %v653 = vsub.f32 %v592, %v649
    %v654 = vsub.f32 %v642, %v652
    %v655 = vmul.f32 %v653, 1.442695
    %v656 = vpow.pop %v655
    %v657 = vmul.f32 %v654, 1.442695
    %v658 = vpow.pop %v657
    %v659 = vsel %vm429, %v656, 0.0
    %660 = vadd.xlane.f32.xlu0 %v659
    %v661 = vpop.xlane.xlu0 %660
    %v662 = vsel %vm429, %v658, 0.0
    %663 = vadd.xlane.f32.xlu0 %v662
    %v664 = vpop.xlane.xlu0 %663
    %v665 = vrcp.pop %v661
    %v666 = vrcp.pop %v664
    %v667 = vmul.f32 %v656, %v665
    %v668 = vmul.f32 %v658, %v666
    %v669 = vpack.c.bf16 %v667, %v667
    %v670 = vpack.c.bf16 %v668, %v668
    %671 = vrot.lane.b32.xlu0 %v334, 96
    %v672 = vpop.permute.xlu0 %671
    %v674 = vsel %vm429, %v669, 0
    %v677 = vsel %vm457, %v672, 0
    %679 = vmatprep.subr.bf16.mxu0 0
    %680 = vmatpush1.bf16.msra.mxu0 %v677
    %681 = vmatprep.subr.bf16.mxu0 0
    %682 = vmatpush1.bf16.msra.mxu0 0
    %683 = vmatprep.subr.bf16.mxu0 0
    %684 = vmatpush1.bf16.msra.mxu0 0
    %685 = vmatprep.subr.bf16.mxu0 0
    %686 = vmatpush1.bf16.msra.mxu0 0
    %687 = vmatprep.subr.bf16.mxu0 0
    %688 = vmatpush1.bf16.msra.mxu0 0
    %689 = vmatprep.subr.bf16.mxu0 0
    %690 = vmatpush1.bf16.msra.mxu0 0
    %691 = vmatprep.subr.bf16.mxu0 0
    %692 = vmatpush1.bf16.msra.mxu0 0
    %693 = vmatprep.subr.bf16.mxu0 0
    %694 = vmatpush1.bf16.msra.mxu0 0
    %695 = vmatprep.subr.bf16.mxu0 0
    %696 = vmatpush1.bf16.msra.mxu0 0
    %697 = vmatprep.subr.bf16.mxu0 0
    %698 = vmatpush1.bf16.msra.mxu0 0
    %699 = vmatprep.subr.bf16.mxu0 0
    %700 = vmatpush1.bf16.msra.mxu0 0
    %701 = vmatprep.subr.bf16.mxu0 0
    %702 = vmatpush1.bf16.msra.mxu0 0
    %703 = vmatprep.subr.bf16.mxu0 0
    %704 = vmatpush1.bf16.msra.mxu0 0
    %705 = vmatprep.subr.bf16.mxu0 0
    %706 = vmatpush1.bf16.msra.mxu0 0
    %707 = vmatprep.subr.bf16.mxu0 0
    %708 = vmatpush1.bf16.msra.mxu0 0
    %709 = vmatprep.subr.bf16.mxu0 0
    %710 = vmatpush1.bf16.msra.mxu0 0
    %711 = vmatprep.mubr.bf16.mxu0 0
    %712 = vmatmul.mubr.bf16.gmra.mrb[0].mxu0 %v674
    %v713 = vpop.f32.mrb[0].mxu0
    %v714 = vadd.f32 0.0, %v713
    %v715 = vpop.f32.mrb[0].mxu0
    %v716 = vpop.f32.mrb[0].mxu0
    %v717 = vpop.f32.mrb[0].mxu0
    %718 = vdwg.mxu0
    %719 = vrot.lane.b32.xlu0 %v335, 96
    %v720 = vpop.permute.xlu0 %719
    %v722 = vsel %vm429, %v670, 0
    %v725 = vsel %vm457, %v720, 0
    %727 = vmatprep.subr.bf16.mxu0 0
    %728 = vmatpush1.bf16.msra.mxu0 %v725
    %729 = vmatprep.subr.bf16.mxu0 0
    %730 = vmatpush1.bf16.msra.mxu0 0
    %731 = vmatprep.subr.bf16.mxu0 0
    %732 = vmatpush1.bf16.msra.mxu0 0
    %733 = vmatprep.subr.bf16.mxu0 0
    %734 = vmatpush1.bf16.msra.mxu0 0
    %735 = vmatprep.subr.bf16.mxu0 0
    %736 = vmatpush1.bf16.msra.mxu0 0
    %737 = vmatprep.subr.bf16.mxu0 0
    %738 = vmatpush1.bf16.msra.mxu0 0
    %739 = vmatprep.subr.bf16.mxu0 0
    %740 = vmatpush1.bf16.msra.mxu0 0
    %741 = vmatprep.subr.bf16.mxu0 0
    %742 = vmatpush1.bf16.msra.mxu0 0
    %743 = vmatprep.subr.bf16.mxu0 0
    %744 = vmatpush1.bf16.msra.mxu0 0
    %745 = vmatprep.subr.bf16.mxu0 0
    %746 = vmatpush1.bf16.msra.mxu0 0
    %747 = vmatprep.subr.bf16.mxu0 0
    %748 = vmatpush1.bf16.msra.mxu0 0
    %749 = vmatprep.subr.bf16.mxu0 0
    %750 = vmatpush1.bf16.msra.mxu0 0
    %751 = vmatprep.subr.bf16.mxu0 0
    %752 = vmatpush1.bf16.msra.mxu0 0
    %753 = vmatprep.subr.bf16.mxu0 0
    %754 = vmatpush1.bf16.msra.mxu0 0
    %755 = vmatprep.subr.bf16.mxu0 0
    %756 = vmatpush1.bf16.msra.mxu0 0
    %757 = vmatprep.subr.bf16.mxu0 0
    %758 = vmatpush1.bf16.msra.mxu0 0
    %759 = vmatprep.mubr.bf16.mxu0 0
    %760 = vmatmul.mubr.bf16.gmra.mrb[0].mxu0 %v722
    %v761 = vpop.f32.mrb[0].mxu0
    %v762 = vadd.f32 0.0, %v761
    %v763 = vpop.f32.mrb[0].mxu0
    %v764 = vpop.f32.mrb[0].mxu0
    %v765 = vpop.f32.mrb[0].mxu0
    %766 = vdwg.mxu0
    %767 = vrot.lane.b32.xlu0 %v324, 64
    %v768 = vpop.permute.xlu0 %767
    %769 = vrot.lane.b32.xlu0 %v329, 64
    %v770 = vpop.permute.xlu0 %769
    %v772 = vsel %vm336, %v768, 0
    %v775 = vsel %vm336, %v770, 0
    %777 = vmatprep.subr.bf16.mxu0 0
    %778 = vmatpush1.bf16.xpose.msra.mxu0 %v775
    %779 = vmatprep.subr.bf16.mxu0 0
    %780 = vmatpush1.bf16.xpose.msra.mxu0 0
    %781 = vmatprep.subr.bf16.mxu0 0
    %782 = vmatpush1.bf16.xpose.msra.mxu0 0
    %783 = vmatprep.subr.bf16.mxu0 0
    %784 = vmatpush1.bf16.xpose.msra.mxu0 0
    %785 = vmatprep.subr.bf16.mxu0 0
    %786 = vmatpush1.bf16.xpose.msra.mxu0 0
    %787 = vmatprep.subr.bf16.mxu0 0
    %788 = vmatpush1.bf16.xpose.msra.mxu0 0
    %789 = vmatprep.subr.bf16.mxu0 0
    %790 = vmatpush1.bf16.xpose.msra.mxu0 0
    %791 = vmatprep.subr.bf16.mxu0 0
    %792 = vmatpush1.bf16.xpose.msra.mxu0 0
    %793 = vmatprep.subr.bf16.mxu0 0
    %794 = vmatpush1.bf16.xpose.msra.mxu0 0
    %795 = vmatprep.subr.bf16.mxu0 0
    %796 = vmatpush1.bf16.xpose.msra.mxu0 0
    %797 = vmatprep.subr.bf16.mxu0 0
    %798 = vmatpush1.bf16.xpose.msra.mxu0 0
    %799 = vmatprep.subr.bf16.mxu0 0
    %800 = vmatpush1.bf16.xpose.msra.mxu0 0
    %801 = vmatprep.subr.bf16.mxu0 0
    %802 = vmatpush1.bf16.xpose.msra.mxu0 0
    %803 = vmatprep.subr.bf16.mxu0 0
    %804 = vmatpush1.bf16.xpose.msra.mxu0 0
    %805 = vmatprep.subr.bf16.mxu0 0
    %806 = vmatpush1.bf16.xpose.msra.mxu0 0
    %807 = vmatprep.subr.bf16.mxu0 0
    %808 = vmatpush1.bf16.xpose.msra.mxu0 0
    %809 = vmatprep.mubr.bf16.mxu0 0
    %810 = vmatmul.mubr.bf16.gmra.mrb[0].mxu0 %v772
    %v811 = vpop.f32.mrb[0].mxu0
    %v812 = vadd.f32 %v320, %v811
    %v813 = vpop.f32.mrb[0].mxu0
    %v814 = vpop.f32.mrb[0].mxu0
    %v815 = vpop.f32.mrb[0].mxu0
    %816 = vdwg.mxu0
    %817 = vrot.lane.b32.xlu0 %v325, 64
    %v818 = vpop.permute.xlu0 %817
    %819 = vrot.lane.b32.xlu0 %v330, 64
    %v820 = vpop.permute.xlu0 %819
    %v822 = vsel %vm336, %v818, 0
    %v825 = vsel %vm336, %v820, 0
    %827 = vmatprep.subr.bf16.mxu0 0
    %828 = vmatpush1.bf16.xpose.msra.mxu0 %v825
    %829 = vmatprep.subr.bf16.mxu0 0
    %830 = vmatpush1.bf16.xpose.msra.mxu0 0
    %831 = vmatprep.subr.bf16.mxu0 0
    %832 = vmatpush1.bf16.xpose.msra.mxu0 0
    %833 = vmatprep.subr.bf16.mxu0 0
    %834 = vmatpush1.bf16.xpose.msra.mxu0 0
    %835 = vmatprep.subr.bf16.mxu0 0
    %836 = vmatpush1.bf16.xpose.msra.mxu0 0
    %837 = vmatprep.subr.bf16.mxu0 0
    %838 = vmatpush1.bf16.xpose.msra.mxu0 0
    %839 = vmatprep.subr.bf16.mxu0 0
    %840 = vmatpush1.bf16.xpose.msra.mxu0 0
    %841 = vmatprep.subr.bf16.mxu0 0
    %842 = vmatpush1.bf16.xpose.msra.mxu0 0
    %843 = vmatprep.subr.bf16.mxu0 0
    %844 = vmatpush1.bf16.xpose.msra.mxu0 0
    %845 = vmatprep.subr.bf16.mxu0 0
    %846 = vmatpush1.bf16.xpose.msra.mxu0 0
    %847 = vmatprep.subr.bf16.mxu0 0
    %848 = vmatpush1.bf16.xpose.msra.mxu0 0
    %849 = vmatprep.subr.bf16.mxu0 0
    %850 = vmatpush1.bf16.xpose.msra.mxu0 0
    %851 = vmatprep.subr.bf16.mxu0 0
    %852 = vmatpush1.bf16.xpose.msra.mxu0 0
    %853 = vmatprep.subr.bf16.mxu0 0
    %854 = vmatpush1.bf16.xpose.msra.mxu0 0
    %855 = vmatprep.subr.bf16.mxu0 0
    %856 = vmatpush1.bf16.xpose.msra.mxu0 0
    %857 = vmatprep.subr.bf16.mxu0 0
    %858 = vmatpush1.bf16.xpose.msra.mxu0 0
    %859 = vmatprep.mubr.bf16.mxu0 0
    %860 = vmatmul.mubr.bf16.gmra.mrb[0].mxu0 %v822
    %v861 = vpop.f32.mrb[0].mxu0
    %v862 = vadd.f32 %v320, %v861
    %v863 = vpop.f32.mrb[0].mxu0
    %v864 = vpop.f32.mrb[0].mxu0
    %v865 = vpop.f32.mrb[0].mxu0
    %866 = vdwg.mxu0
    %v867 = vsel %vm429, %v812, -inf
    %868 = vmax.xlane.f32.xlu0 %v867
    %v869 = vpop.xlane.xlu0 %868
    %v870 = vsel %vm429, %v862, -inf
    %871 = vmax.xlane.f32.xlu0 %v870
    %v872 = vpop.xlane.xlu0 %871
    %v873 = vsub.f32 %v812, %v869
    %v874 = vsub.f32 %v862, %v872
    %v875 = vmul.f32 %v873, 1.442695
    %v876 = vpow.pop %v875
    %v877 = vmul.f32 %v874, 1.442695
    %v878 = vpow.pop %v877
    %v879 = vsel %vm429, %v876, 0.0
    %880 = vadd.xlane.f32.xlu0 %v879
    %v881 = vpop.xlane.xlu0 %880
    %v882 = vsel %vm429, %v878, 0.0
    %883 = vadd.xlane.f32.xlu0 %v882
    %v884 = vpop.xlane.xlu0 %883
    %v885 = vrcp.pop %v881
    %v886 = vrcp.pop %v884
    %v887 = vmul.f32 %v876, %v885
    %v888 = vmul.f32 %v878, %v886
    %v889 = vpack.c.bf16 %v887, %v887
    %v890 = vpack.c.bf16 %v888, %v888
    %891 = vrot.lane.b32.xlu0 %v334, 64
    %v892 = vpop.permute.xlu0 %891
    %v894 = vsel %vm429, %v889, 0
    %v897 = vsel %vm457, %v892, 0
    %899 = vmatprep.subr.bf16.mxu0 0
    %900 = vmatpush1.bf16.msra.mxu0 %v897
    %901 = vmatprep.subr.bf16.mxu0 0
    %902 = vmatpush1.bf16.msra.mxu0 0
    %903 = vmatprep.subr.bf16.mxu0 0
    %904 = vmatpush1.bf16.msra.mxu0 0
    %905 = vmatprep.subr.bf16.mxu0 0
    %906 = vmatpush1.bf16.msra.mxu0 0
    %907 = vmatprep.subr.bf16.mxu0 0
    %908 = vmatpush1.bf16.msra.mxu0 0
    %909 = vmatprep.subr.bf16.mxu0 0
    %910 = vmatpush1.bf16.msra.mxu0 0
    %911 = vmatprep.subr.bf16.mxu0 0
    %912 = vmatpush1.bf16.msra.mxu0 0
    %913 = vmatprep.subr.bf16.mxu0 0
    %914 = vmatpush1.bf16.msra.mxu0 0
    %915 = vmatprep.subr.bf16.mxu0 0
    %916 = vmatpush1.bf16.msra.mxu0 0
    %917 = vmatprep.subr.bf16.mxu0 0
    %918 = vmatpush1.bf16.msra.mxu0 0
    %919 = vmatprep.subr.bf16.mxu0 0
    %920 = vmatpush1.bf16.msra.mxu0 0
    %921 = vmatprep.subr.bf16.mxu0 0
    %922 = vmatpush1.bf16.msra.mxu0 0
    %923 = vmatprep.subr.bf16.mxu0 0
    %924 = vmatpush1.bf16.msra.mxu0 0
    %925 = vmatprep.subr.bf16.mxu0 0
    %926 = vmatpush1.bf16.msra.mxu0 0
    %927 = vmatprep.subr.bf16.mxu0 0
    %928 = vmatpush1.bf16.msra.mxu0 0
    %929 = vmatprep.subr.bf16.mxu0 0
    %930 = vmatpush1.bf16.msra.mxu0 0
    %931 = vmatprep.mubr.bf16.mxu0 0
    %932 = vmatmul.mubr.bf16.gmra.mrb[0].mxu0 %v894
    %v933 = vpop.f32.mrb[0].mxu0
    %v934 = vadd.f32 0.0, %v933
    %v935 = vpop.f32.mrb[0].mxu0
    %v936 = vpop.f32.mrb[0].mxu0
    %v937 = vpop.f32.mrb[0].mxu0
    %938 = vdwg.mxu0
    %939 = vrot.lane.b32.xlu0 %v335, 64
    %v940 = vpop.permute.xlu0 %939
    %v942 = vsel %vm429, %v890, 0
    %v945 = vsel %vm457, %v940, 0
    %947 = vmatprep.subr.bf16.mxu0 0
    %948 = vmatpush1.bf16.msra.mxu0 %v945
    %949 = vmatprep.subr.bf16.mxu0 0
    %950 = vmatpush1.bf16.msra.mxu0 0
    %951 = vmatprep.subr.bf16.mxu0 0
    %952 = vmatpush1.bf16.msra.mxu0 0
    %953 = vmatprep.subr.bf16.mxu0 0
    %954 = vmatpush1.bf16.msra.mxu0 0
    %955 = vmatprep.subr.bf16.mxu0 0
    %956 = vmatpush1.bf16.msra.mxu0 0
    %957 = vmatprep.subr.bf16.mxu0 0
    %958 = vmatpush1.bf16.msra.mxu0 0
    %959 = vmatprep.subr.bf16.mxu0 0
    %960 = vmatpush1.bf16.msra.mxu0 0
    %961 = vmatprep.subr.bf16.mxu0 0
    %962 = vmatpush1.bf16.msra.mxu0 0
    %963 = vmatprep.subr.bf16.mxu0 0
    %964 = vmatpush1.bf16.msra.mxu0 0
    %965 = vmatprep.subr.bf16.mxu0 0
    %966 = vmatpush1.bf16.msra.mxu0 0
    %967 = vmatprep.subr.bf16.mxu0 0
    %968 = vmatpush1.bf16.msra.mxu0 0
    %969 = vmatprep.subr.bf16.mxu0 0
    %970 = vmatpush1.bf16.msra.mxu0 0
    %971 = vmatprep.subr.bf16.mxu0 0
    %972 = vmatpush1.bf16.msra.mxu0 0
    %973 = vmatprep.subr.bf16.mxu0 0
    %974 = vmatpush1.bf16.msra.mxu0 0
    %975 = vmatprep.subr.bf16.mxu0 0
    %976 = vmatpush1.bf16.msra.mxu0 0
    %977 = vmatprep.subr.bf16.mxu0 0
    %978 = vmatpush1.bf16.msra.mxu0 0
    %979 = vmatprep.mubr.bf16.mxu0 0
    %980 = vmatmul.mubr.bf16.gmra.mrb[0].mxu0 %v942
    %v981 = vpop.f32.mrb[0].mxu0
    %v982 = vadd.f32 0.0, %v981
    %v983 = vpop.f32.mrb[0].mxu0
    %v984 = vpop.f32.mrb[0].mxu0
    %v985 = vpop.f32.mrb[0].mxu0
    %986 = vdwg.mxu0
    %987 = vrot.lane.b32.xlu0 %v324, 32
    %v988 = vpop.permute.xlu0 %987
    %989 = vrot.lane.b32.xlu0 %v329, 32
    %v990 = vpop.permute.xlu0 %989
    %v992 = vsel %vm336, %v988, 0
    %v995 = vsel %vm336, %v990, 0
    %997 = vmatprep.subr.bf16.mxu0 0
    %998 = vmatpush1.bf16.xpose.msra.mxu0 %v995
    %999 = vmatprep.subr.bf16.mxu0 0
    %1000 = vmatpush1.bf16.xpose.msra.mxu0 0
    %1001 = vmatprep.subr.bf16.mxu0 0
    %1002 = vmatpush1.bf16.xpose.msra.mxu0 0
    %1003 = vmatprep.subr.bf16.mxu0 0
    %1004 = vmatpush1.bf16.xpose.msra.mxu0 0
    %1005 = vmatprep.subr.bf16.mxu0 0
    %1006 = vmatpush1.bf16.xpose.msra.mxu0 0
    %1007 = vmatprep.subr.bf16.mxu0 0
    %1008 = vmatpush1.bf16.xpose.msra.mxu0 0
    %1009 = vmatprep.subr.bf16.mxu0 0
    %1010 = vmatpush1.bf16.xpose.msra.mxu0 0
    %1011 = vmatprep.subr.bf16.mxu0 0
    %1012 = vmatpush1.bf16.xpose.msra.mxu0 0
    %1013 = vmatprep.subr.bf16.mxu0 0
    %1014 = vmatpush1.bf16.xpose.msra.mxu0 0
    %1015 = vmatprep.subr.bf16.mxu0 0
    %1016 = vmatpush1.bf16.xpose.msra.mxu0 0
    %1017 = vmatprep.subr.bf16.mxu0 0
    %1018 = vmatpush1.bf16.xpose.msra.mxu0 0
    %1019 = vmatprep.subr.bf16.mxu0 0
    %1020 = vmatpush1.bf16.xpose.msra.mxu0 0
    %1021 = vmatprep.subr.bf16.mxu0 0
    %1022 = vmatpush1.bf16.xpose.msra.mxu0 0
    %1023 = vmatprep.subr.bf16.mxu0 0
    %1024 = vmatpush1.bf16.xpose.msra.mxu0 0
    %1025 = vmatprep.subr.bf16.mxu0 0
    %1026 = vmatpush1.bf16.xpose.msra.mxu0 0
    %1027 = vmatprep.subr.bf16.mxu0 0
    %1028 = vmatpush1.bf16.xpose.msra.mxu0 0
    %1029 = vmatprep.mubr.bf16.mxu0 0
    %1030 = vmatmul.mubr.bf16.gmra.mrb[0].mxu0 %v992
    %v1031 = vpop.f32.mrb[0].mxu0
    %v1032 = vadd.f32 %v320, %v1031
    %v1033 = vpop.f32.mrb[0].mxu0
    %v1034 = vpop.f32.mrb[0].mxu0
    %v1035 = vpop.f32.mrb[0].mxu0
    %1036 = vdwg.mxu0
    %1037 = vrot.lane.b32.xlu0 %v325, 32
    %v1038 = vpop.permute.xlu0 %1037
    %1039 = vrot.lane.b32.xlu0 %v330, 32
    %v1040 = vpop.permute.xlu0 %1039
    %v1042 = vsel %vm336, %v1038, 0
    %v1045 = vsel %vm336, %v1040, 0
    %1047 = vmatprep.subr.bf16.mxu0 0
    %1048 = vmatpush1.bf16.xpose.msra.mxu0 %v1045
    %1049 = vmatprep.subr.bf16.mxu0 0
    %1050 = vmatpush1.bf16.xpose.msra.mxu0 0
    %1051 = vmatprep.subr.bf16.mxu0 0
    %1052 = vmatpush1.bf16.xpose.msra.mxu0 0
    %1053 = vmatprep.subr.bf16.mxu0 0
    %1054 = vmatpush1.bf16.xpose.msra.mxu0 0
    %1055 = vmatprep.subr.bf16.mxu0 0
    %1056 = vmatpush1.bf16.xpose.msra.mxu0 0
    %1057 = vmatprep.subr.bf16.mxu0 0
    %1058 = vmatpush1.bf16.xpose.msra.mxu0 0
    %1059 = vmatprep.subr.bf16.mxu0 0
    %1060 = vmatpush1.bf16.xpose.msra.mxu0 0
    %1061 = vmatprep.subr.bf16.mxu0 0
    %1062 = vmatpush1.bf16.xpose.msra.mxu0 0
    %1063 = vmatprep.subr.bf16.mxu0 0
    %1064 = vmatpush1.bf16.xpose.msra.mxu0 0
    %1065 = vmatprep.subr.bf16.mxu0 0
    %1066 = vmatpush1.bf16.xpose.msra.mxu0 0
    %1067 = vmatprep.subr.bf16.mxu0 0
    %1068 = vmatpush1.bf16.xpose.msra.mxu0 0
    %1069 = vmatprep.subr.bf16.mxu0 0
    %1070 = vmatpush1.bf16.xpose.msra.mxu0 0
    %1071 = vmatprep.subr.bf16.mxu0 0
    %1072 = vmatpush1.bf16.xpose.msra.mxu0 0
    %1073 = vmatprep.subr.bf16.mxu0 0
    %1074 = vmatpush1.bf16.xpose.msra.mxu0 0
    %1075 = vmatprep.subr.bf16.mxu0 0
    %1076 = vmatpush1.bf16.xpose.msra.mxu0 0
    %1077 = vmatprep.subr.bf16.mxu0 0
    %1078 = vmatpush1.bf16.xpose.msra.mxu0 0
    %1079 = vmatprep.mubr.bf16.mxu0 0
    %1080 = vmatmul.mubr.bf16.gmra.mrb[0].mxu0 %v1042
    %v1081 = vpop.f32.mrb[0].mxu0
    %v1082 = vadd.f32 %v320, %v1081
    %v1083 = vpop.f32.mrb[0].mxu0
    %v1084 = vpop.f32.mrb[0].mxu0
    %v1085 = vpop.f32.mrb[0].mxu0
    %1086 = vdwg.mxu0
    %v1087 = vsel %vm429, %v1032, -inf
    %1088 = vmax.xlane.f32.xlu0 %v1087
    %v1089 = vpop.xlane.xlu0 %1088
    %v1090 = vsel %vm429, %v1082, -inf
    %1091 = vmax.xlane.f32.xlu0 %v1090
    %v1092 = vpop.xlane.xlu0 %1091
    %v1093 = vsub.f32 %v1032, %v1089
    %v1094 = vsub.f32 %v1082, %v1092
    %v1095 = vmul.f32 %v1093, 1.442695
    %v1096 = vpow.pop %v1095
    %v1097 = vmul.f32 %v1094, 1.442695
    %v1098 = vpow.pop %v1097
    %v1099 = vsel %vm429, %v1096, 0.0
    %1100 = vadd.xlane.f32.xlu0 %v1099
    %v1101 = vpop.xlane.xlu0 %1100
    %v1102 = vsel %vm429, %v1098, 0.0
    %1103 = vadd.xlane.f32.xlu0 %v1102
    %v1104 = vpop.xlane.xlu0 %1103
    %v1105 = vrcp.pop %v1101
    %v1106 = vrcp.pop %v1104
    %v1107 = vmul.f32 %v1096, %v1105
    %v1108 = vmul.f32 %v1098, %v1106
    %v1109 = vpack.c.bf16 %v1107, %v1107
    %v1110 = vpack.c.bf16 %v1108, %v1108
    %1111 = vrot.lane.b32.xlu0 %v334, 32
    %v1112 = vpop.permute.xlu0 %1111
    %v1114 = vsel %vm429, %v1109, 0
    %v1117 = vsel %vm457, %v1112, 0
    %1119 = vmatprep.subr.bf16.mxu0 0
    %1120 = vmatpush1.bf16.msra.mxu0 %v1117
    %1121 = vmatprep.subr.bf16.mxu0 0
    %1122 = vmatpush1.bf16.msra.mxu0 0
    %1123 = vmatprep.subr.bf16.mxu0 0
    %1124 = vmatpush1.bf16.msra.mxu0 0
    %1125 = vmatprep.subr.bf16.mxu0 0
    %1126 = vmatpush1.bf16.msra.mxu0 0
    %1127 = vmatprep.subr.bf16.mxu0 0
    %1128 = vmatpush1.bf16.msra.mxu0 0
    %1129 = vmatprep.subr.bf16.mxu0 0
    %1130 = vmatpush1.bf16.msra.mxu0 0
    %1131 = vmatprep.subr.bf16.mxu0 0
    %1132 = vmatpush1.bf16.msra.mxu0 0
    %1133 = vmatprep.subr.bf16.mxu0 0
    %1134 = vmatpush1.bf16.msra.mxu0 0
    %1135 = vmatprep.subr.bf16.mxu0 0
    %1136 = vmatpush1.bf16.msra.mxu0 0
    %1137 = vmatprep.subr.bf16.mxu0 0
    %1138 = vmatpush1.bf16.msra.mxu0 0
    %1139 = vmatprep.subr.bf16.mxu0 0
    %1140 = vmatpush1.bf16.msra.mxu0 0
    %1141 = vmatprep.subr.bf16.mxu0 0
    %1142 = vmatpush1.bf16.msra.mxu0 0
    %1143 = vmatprep.subr.bf16.mxu0 0
    %1144 = vmatpush1.bf16.msra.mxu0 0
    %1145 = vmatprep.subr.bf16.mxu0 0
    %1146 = vmatpush1.bf16.msra.mxu0 0
    %1147 = vmatprep.subr.bf16.mxu0 0
    %1148 = vmatpush1.bf16.msra.mxu0 0
    %1149 = vmatprep.subr.bf16.mxu0 0
    %1150 = vmatpush1.bf16.msra.mxu0 0
    %1151 = vmatprep.mubr.bf16.mxu0 0
    %1152 = vmatmul.mubr.bf16.gmra.mrb[0].mxu0 %v1114
    %v1153 = vpop.f32.mrb[0].mxu0
    %v1154 = vadd.f32 0.0, %v1153
    %v1155 = vpop.f32.mrb[0].mxu0
    %v1156 = vpop.f32.mrb[0].mxu0
    %v1157 = vpop.f32.mrb[0].mxu0
    %1158 = vdwg.mxu0
    %1159 = vrot.lane.b32.xlu0 %v335, 32
    %v1160 = vpop.permute.xlu0 %1159
    %v1162 = vsel %vm429, %v1110, 0
    %v1165 = vsel %vm457, %v1160, 0
    %1167 = vmatprep.subr.bf16.mxu0 0
    %1168 = vmatpush1.bf16.msra.mxu0 %v1165
    %1169 = vmatprep.subr.bf16.mxu0 0
    %1170 = vmatpush1.bf16.msra.mxu0 0
    %1171 = vmatprep.subr.bf16.mxu0 0
    %1172 = vmatpush1.bf16.msra.mxu0 0
    %1173 = vmatprep.subr.bf16.mxu0 0
    %1174 = vmatpush1.bf16.msra.mxu0 0
    %1175 = vmatprep.subr.bf16.mxu0 0
    %1176 = vmatpush1.bf16.msra.mxu0 0
    %1177 = vmatprep.subr.bf16.mxu0 0
    %1178 = vmatpush1.bf16.msra.mxu0 0
    %1179 = vmatprep.subr.bf16.mxu0 0
    %1180 = vmatpush1.bf16.msra.mxu0 0
    %1181 = vmatprep.subr.bf16.mxu0 0
    %1182 = vmatpush1.bf16.msra.mxu0 0
    %1183 = vmatprep.subr.bf16.mxu0 0
    %1184 = vmatpush1.bf16.msra.mxu0 0
    %1185 = vmatprep.subr.bf16.mxu0 0
    %1186 = vmatpush1.bf16.msra.mxu0 0
    %1187 = vmatprep.subr.bf16.mxu0 0
    %1188 = vmatpush1.bf16.msra.mxu0 0
    %1189 = vmatprep.subr.bf16.mxu0 0
    %1190 = vmatpush1.bf16.msra.mxu0 0
    %1191 = vmatprep.subr.bf16.mxu0 0
    %1192 = vmatpush1.bf16.msra.mxu0 0
    %1193 = vmatprep.subr.bf16.mxu0 0
    %1194 = vmatpush1.bf16.msra.mxu0 0
    %1195 = vmatprep.subr.bf16.mxu0 0
    %1196 = vmatpush1.bf16.msra.mxu0 0
    %1197 = vmatprep.subr.bf16.mxu0 0
    %1198 = vmatpush1.bf16.msra.mxu0 0
    %1199 = vmatprep.mubr.bf16.mxu0 0
    %1200 = vmatmul.mubr.bf16.gmra.mrb[0].mxu0 %v1162
    %v1201 = vpop.f32.mrb[0].mxu0
    %v1202 = vadd.f32 0.0, %v1201
    %v1203 = vpop.f32.mrb[0].mxu0
    %v1204 = vpop.f32.mrb[0].mxu0
    %v1205 = vpop.f32.mrb[0].mxu0
    %1206 = vdwg.mxu0
    %1209 = vrot.lane.b32.xlu0 %v714, 32
    %v1210 = vpop.permute.xlu0 %1209
    %1211 = vrot.lane.b32.xlu0 %v762, 32
    %v1212 = vpop.permute.xlu0 %1211
    %1217 = vrot.lane.b32.xlu0 %v934, 64
    %v1218 = vpop.permute.xlu0 %1217
    %1219 = vrot.lane.b32.xlu0 %v982, 64
    %v1220 = vpop.permute.xlu0 %1219
    %1225 = vrot.lane.b32.xlu0 %v1154, 96
    %v1226 = vpop.permute.xlu0 %1225
    %1227 = vrot.lane.b32.xlu0 %v1202, 96
    %v1228 = vpop.permute.xlu0 %1227
    %v1231 = vsel %vm336, %v496, %v1210
    %v1232 = vsel %vm336, %v542, %v1212
    %vm1233 = vcmask 523264
    %v1234 = vsel %vm1233, %v1231, %v1218
    %v1235 = vsel %vm1233, %v1232, %v1220
    %vm1236 = vcmask 785408
    %v1237 = vsel %vm1236, %v1234, %v1226
    %v1238 = vsel %vm1236, %v1235, %v1228
    %v1239 = vpack.c.bf16 %v1238, %v1237
    %v1240 = vld [vmem:[#allocation7] sm:$0xf]
    %v1241 = vld [vmem:[#allocation7 + $0x4] sm:$0xf]
    %v1242 = vld [vmem:[#allocation7 + $0x8] sm:$0xf]
    %v1243 = vld [vmem:[#allocation7 + $0xc] sm:$0xf]
    %v1244 = vld [vmem:[#allocation7 + $0x10] sm:$0xf]
    %v1245 = vld [vmem:[#allocation7 + $0x14] sm:$0xf]
    %v1246 = vld [vmem:[#allocation7 + $0x18] sm:$0xf]
    %v1247 = vld [vmem:[#allocation7 + $0x1c] sm:$0xf]
    %v1248 = vld [vmem:[#allocation7 + $0x20] sm:$0xf]
    %v1249 = vld [vmem:[#allocation7 + $0x24] sm:$0xf]
    %v1250 = vld [vmem:[#allocation7 + $0x28] sm:$0xf]
    %v1251 = vld [vmem:[#allocation7 + $0x2c] sm:$0xf]
    %v1252 = vld [vmem:[#allocation7 + $0x30] sm:$0xf]
    %v1253 = vld [vmem:[#allocation7 + $0x34] sm:$0xf]
    %v1254 = vld [vmem:[#allocation7 + $0x38] sm:$0xf]
    %v1255 = vld [vmem:[#allocation7 + $0x3c] sm:$0xf]
    %v1256 = vld [vmem:[%s3] sm:$0x1]
    %v1258 = vlaneseq
    %v1259 = vshrl.u32 %v1258, 7
    %v1260 = vsub.s32 0, %v1259
    %v1261 = vrot.slane %v1256, %v1260
    %v1279 = vunpack.c.l.b16 %v1240
    %v1280 = vunpack.c.l.b16 %v1241
    %v1281 = vunpack.c.l.b16 %v1242
    %v1282 = vunpack.c.l.b16 %v1243
    %v1283 = vunpack.c.l.b16 %v1244
    %v1284 = vunpack.c.l.b16 %v1245
    %v1285 = vunpack.c.l.b16 %v1246
    %v1286 = vunpack.c.l.b16 %v1247
    %v1287 = vunpack.c.l.b16 %v1248
    %v1288 = vunpack.c.l.b16 %v1249
    %v1289 = vunpack.c.l.b16 %v1250
    %v1290 = vunpack.c.l.b16 %v1251
    %v1291 = vunpack.c.l.b16 %v1252
    %v1292 = vunpack.c.l.b16 %v1253
    %v1293 = vunpack.c.l.b16 %v1254
    %v1294 = vunpack.c.l.b16 %v1255
    %v1295 = vpack.c.b16 %v1280, %v1279
    %v1296 = vpack.c.b16 %v1282, %v1281
    %v1297 = vpack.c.b16 %v1284, %v1283
    %v1298 = vpack.c.b16 %v1286, %v1285
    %v1299 = vpack.c.b16 %v1288, %v1287
    %v1300 = vpack.c.b16 %v1290, %v1289
    %v1301 = vpack.c.b16 %v1292, %v1291
    %v1302 = vpack.c.b16 %v1294, %v1293
    %1311 = vmatprep.subr.bf16.mxu0 0
    %1312 = vmatpush1.bf16.msra.mxu0 %v1295
    %1313 = vmatprep.subr.bf16.mxu0 0
    %1314 = vmatpush1.bf16.msra.mxu0 %v1296
    %1315 = vmatprep.subr.bf16.mxu0 0
    %1316 = vmatpush1.bf16.msra.mxu0 %v1297
    %1317 = vmatprep.subr.bf16.mxu0 0
    %1318 = vmatpush1.bf16.msra.mxu0 %v1298
    %1319 = vmatprep.subr.bf16.mxu0 0
    %1320 = vmatpush1.bf16.msra.mxu0 %v1299
    %1321 = vmatprep.subr.bf16.mxu0 0
    %1322 = vmatpush1.bf16.msra.mxu0 %v1300
    %1323 = vmatprep.subr.bf16.mxu0 0
    %1324 = vmatpush1.bf16.msra.mxu0 %v1301
    %1325 = vmatprep.subr.bf16.mxu0 0
    %1326 = vmatpush1.bf16.msra.mxu0 %v1302
    %1327 = vmatprep.subr.bf16.mxu0 0
    %1328 = vmatpush1.bf16.msra.mxu0 0
    %1329 = vmatprep.subr.bf16.mxu0 0
    %1330 = vmatpush1.bf16.msra.mxu0 0
    %1331 = vmatprep.subr.bf16.mxu0 0
    %1332 = vmatpush1.bf16.msra.mxu0 0
    %1333 = vmatprep.subr.bf16.mxu0 0
    %1334 = vmatpush1.bf16.msra.mxu0 0
    %1335 = vmatprep.subr.bf16.mxu0 0
    %1336 = vmatpush1.bf16.msra.mxu0 0
    %1337 = vmatprep.subr.bf16.mxu0 0
    %1338 = vmatpush1.bf16.msra.mxu0 0
    %1339 = vmatprep.subr.bf16.mxu0 0
    %1340 = vmatpush1.bf16.msra.mxu0 0
    %1341 = vmatprep.subr.bf16.mxu0 0
    %1342 = vmatpush1.bf16.msra.mxu0 0
    %1343 = vmatprep.mubr.bf16.mxu0 0
    %1344 = vmatmul.mubr.bf16.gmra.mrb[0].mxu0 %v1239
    %v1345 = vpop.f32.mrb[0].mxu0
    %v1346 = vadd.f32 %v1261, %v1345
    %v1347 = vpop.f32.mrb[0].mxu0
    %v1348 = vpop.f32.mrb[0].mxu0
    %v1349 = vadd.f32 %v1261, %v1348
    %v1350 = vpop.f32.mrb[0].mxu0
    %1351 = vdwg.mxu0
    %v1352 = vpack.c.bf16 %v1349, %v1346
    %v1354 = vunpack.c.l.b16 %v1352
    %v1355 = vunpack.c.h.b16 %v1352
    %v1356 = vpack.c.b16 %v1354, %v1354
    %v1357 = vpack.c.b16 %v1355, %v1355
    %1360 = vst [vmem:[#allocation8] sm:$0xf] %v1356
    %1361 = vst [vmem:[#allocation8 + $0x4] sm:$0xf] %v1357
    // Predicated region
    $region30: #{tpu_custom_call.1} parent=1 // pred_check
      _
    $region31: #{tpu_custom_call.1} parent=1 // pred_check_branch
      %1363 = sbr.rel (0) target = $region33
    $region32: #{tpu_custom_call.1} parent=1 // pred_region
      %s1365 = ssub.s32 128, 128
      %1366 = vsyncadd [#allocation4], %s1365
      %s1367 = sshll.u32 [#allocation8], 4
      %s1368 = int_to_ptr.vmem [resolvable:$true] %s1367
      %1373 = dma.vmem_to_hbm [thread:$0]  %s1368, 128, %s4, [#allocation4], 64, 64, 4
    $region33: #{tpu_custom_call.1} parent=1 // pred_fallthru
      _
    // Predicated region
    $region34: #{tpu_custom_call.1} parent=1 // pred_check
      _
    $region35: #{tpu_custom_call.1} parent=1 // pred_check_branch
      %1375 = sbr.rel (0) target = $region37
    $region36: #{tpu_custom_call.1} parent=1 // pred_region
      %1376 = dma.done [#allocation4], 128
    $region37: #{tpu_custom_call.1} parent=1 // pred_fallthru
      _
    %1377 = vsyncpa [#allocation3], 1
    %1378 = vsyncpa [#allocation6], 1
    %1379 = vsyncpa [#allocation4], 1

</llo_original>
